<compile_context>
chip_gen: v6e
topology: v6e:2x2x1
jax: 0.10.0
libtpu: 0.0.40
codegen_flags: <defaults>
</compile_context>

<pallas_src>
import functools

import jax
import jax.numpy as jnp
from jax import lax
from jax.experimental import pallas as pl
from jax.experimental.pallas import tpu as pltpu


def _round_up(n, m):
    return (n + m - 1) // m * m


def _convgru_kernel(mask_ref, x_ref, h_ref, w1_ref, b1_ref, w2_ref, out_ref,
                    p1_ref, p2_ref, *, W, B_TILE, NC_PAD, CH_PAD):
    # mask_ref: (9, HW) f32      1.0 where the tap reads in-bounds, else 0.0
    # x_ref   : (B_TILE, Ci, HW) h_ref : (B_TILE, Ch, HW)
    # w1_ref  : (3*Ch, 9*NC_PAD) rows = [reset | update | candidate-x-part]
    # b1_ref  : (3*Ch, 1)        rows = [bg_reset | bg_update | bc]
    # w2_ref  : (Ch, 9*CH_PAD)   candidate h-part (applied to reset*h patches)
    # out_ref : (B_TILE, Ch, HW)
    # p1_ref  : (9*NC_PAD, B_TILE*HW) conv1 im2col scratch (aligned tap groups)
    # p2_ref  : (9*CH_PAD, B_TILE*HW) conv2 im2col scratch
    Ci = x_ref.shape[1]
    Ch = h_ref.shape[1]
    HW = x_ref.shape[2]
    nc = Ci + Ch
    pdt = p1_ref.dtype

    taps = [(dy, dx) for dy in (-1, 0, 1) for dx in (-1, 0, 1)]
    valid = mask_ref[...] != 0.0                       # (9, HW) bool, once/step

    # ---- im2col patches for conv1 (gates + candidate x-contribution) -------
    for b in range(B_TILE):
        x = x_ref[b].astype(jnp.float32)               # (Ci, HW)
        h = h_ref[b].astype(jnp.float32)               # (Ch, HW)
        pieces = [x, h]
        if NC_PAD > nc:                                # explicit zero pad rows
            pieces.append(jnp.zeros((NC_PAD - nc, HW), jnp.float32))
        xh = jnp.concatenate(pieces, axis=0)           # (NC_PAD, HW)
        for t, (dy, dx) in enumerate(taps):
            sh = (-(dy * W + dx)) % HW                 # out[p] = in[p + dy*W+dx]
            rolled = xh if sh == 0 else pltpu.roll(xh, sh, axis=1)
            patch = jnp.where(valid[t:t + 1, :], rolled, 0.0)
            p1_ref[t * NC_PAD:(t + 1) * NC_PAD,
                   b * HW:(b + 1) * HW] = patch.astype(pdt)

    acc1 = jnp.dot(w1_ref[...], p1_ref[...],
                   preferred_element_type=jnp.float32) + b1_ref[...]
    reset = jax.nn.sigmoid(acc1[:Ch, :])               # (Ch, B_TILE*HW)
    update = jax.nn.sigmoid(acc1[Ch:2 * Ch, :])
    cand_x = acc1[2 * Ch:, :]

    # ---- im2col patches of reset*h for conv2 --------------------------------
    for b in range(B_TILE):
        h = h_ref[b].astype(jnp.float32)
        rh = reset[:, b * HW:(b + 1) * HW] * h         # (Ch, HW)
        if CH_PAD > Ch:
            rh = jnp.concatenate(
                [rh, jnp.zeros((CH_PAD - Ch, HW), jnp.float32)], axis=0)
        for t, (dy, dx) in enumerate(taps):
            sh = (-(dy * W + dx)) % HW
            rolled = rh if sh == 0 else pltpu.roll(rh, sh, axis=1)
            patch = jnp.where(valid[t:t + 1, :], rolled, 0.0)
            p2_ref[t * CH_PAD:(t + 1) * CH_PAD,
                   b * HW:(b + 1) * HW] = patch.astype(pdt)

    acc2 = jnp.dot(w2_ref[...], p2_ref[...], preferred_element_type=jnp.float32)
    cand = jnp.tanh(cand_x + acc2)                     # (Ch, B_TILE*HW)

    # ---- epilogue: next_h = cand + update * (h - cand) ----------------------
    for b in range(B_TILE):
        h = h_ref[b].astype(jnp.float32)
        c_b = cand[:, b * HW:(b + 1) * HW]
        u_b = update[:, b * HW:(b + 1) * HW]
        out_ref[b] = (c_b + u_b * (h - c_b)).astype(out_ref.dtype)


def _w_to_mat(w, group_pad):
    """OIHW (Cout, Cin, 3, 3) -> (Cout, 9*group_pad).

    Columns ordered (kh, kw, cin) with each per-tap group zero-padded from Cin
    to group_pad columns (matching the sublane-aligned patch row groups).
    """
    co, ci, kh, kw = w.shape
    m = jnp.transpose(w, (0, 2, 3, 1))                 # (co, kh, kw, ci)
    if group_pad > ci:
        m = jnp.pad(m, ((0, 0), (0, 0), (0, 0), (0, group_pad - ci)))
    return m.reshape(co, kh * kw * group_pad)


def _pick_batch_tile(n, hw, max_lanes):
    """Largest divisor of n with >=2 grid steps (when n>=2) and bt*hw<=max_lanes."""
    best = 1
    for bt in range(1, n + 1):
        if n % bt:
            continue
        if bt * hw > max_lanes:
            continue
        if n >= 2 and n // bt < 2:
            continue
        best = bt
    return best


def conv_gru_cell(x, hidden, wg, bg, wc, bc, *, mxu_dtype=None,
                  max_lane_tile=1024):
    """ConvGRUCell forward (NCHW / OIHW, matching the PyTorch module).

    x: (N, Ci, H, W); hidden: (N, Ch, H, W) or None.
    wg: (2*Ch, Ci+Ch, 3, 3), bg: (2*Ch,)   -- ConvGates
    wc: (Ch,   Ci+Ch, 3, 3), bc: (Ch,)     -- Conv_ct
    mxu_dtype: optional narrower dtype (e.g. jnp.bfloat16) for MXU operands /
               patch scratch; accumulation stays float32.
    """
    N, Ci, H, W = x.shape
    Ch = wc.shape[0]
    HW = H * W
    if hidden is None:
        hidden = jnp.zeros((N, Ch, H, W), x.dtype)

    NC_PAD = _round_up(Ci + Ch, 8)          # sublane-aligned conv1 tap groups
    CH_PAD = _round_up(Ch, 8)               # sublane-aligned conv2 tap groups
    patch_dtype = jnp.float32 if mxu_dtype is None else mxu_dtype

    # Fold the candidate conv's x-weights into the gate matmul (rows 2Ch:3Ch,
    # zeros on the hidden-channel columns) so the x patches are shared.
    wc_xonly = jnp.concatenate([wc[:, :Ci], jnp.zeros_like(wc[:, Ci:])], axis=1)
    w1 = jnp.concatenate([_w_to_mat(wg, NC_PAD), _w_to_mat(wc_xonly, NC_PAD)],
                         axis=0).astype(patch_dtype)
    w2 = _w_to_mat(wc[:, Ci:], CH_PAD).astype(patch_dtype)
    b1 = jnp.concatenate([bg, bc]).reshape(3 * Ch, 1).astype(jnp.float32)

    # Grid-invariant 3x3 'same'-padding validity masks, hoisted to the host.
    pos = jnp.arange(HW, dtype=jnp.int32)
    row, col = pos // W, pos % W
    taps = [(dy, dx) for dy in (-1, 0, 1) for dx in (-1, 0, 1)]
    mask = jnp.stack([
        ((row + dy >= 0) & (row + dy < H) & (col + dx >= 0) & (col + dx < W))
        for dy, dx in taps]).astype(jnp.float32)        # (9, HW)

    B_TILE = _pick_batch_tile(N, HW, max_lane_tile)
    grid = (N // B_TILE,)

    kernel = functools.partial(_convgru_kernel, W=W, B_TILE=B_TILE,
                               NC_PAD=NC_PAD, CH_PAD=CH_PAD)
    out = pl.pallas_call(
        kernel,
        out_shape=jax.ShapeDtypeStruct((N, Ch, HW), x.dtype),
        grid=grid,
        in_specs=[
            pl.BlockSpec((9, HW), lambda b: (0, 0)),                 # mask
            pl.BlockSpec((B_TILE, Ci, HW), lambda b: (b, 0, 0)),     # x
            pl.BlockSpec((B_TILE, Ch, HW), lambda b: (b, 0, 0)),     # hidden
            pl.BlockSpec(w1.shape, lambda b: (0, 0)),                # w1
            pl.BlockSpec(b1.shape, lambda b: (0, 0)),                # b1
            pl.BlockSpec(w2.shape, lambda b: (0, 0)),                # w2
        ],
        out_specs=pl.BlockSpec((B_TILE, Ch, HW), lambda b: (b, 0, 0)),
        scratch_shapes=[
            pltpu.VMEM((9 * NC_PAD, B_TILE * HW), patch_dtype),      # conv1 patches
            pltpu.VMEM((9 * CH_PAD, B_TILE * HW), patch_dtype),      # conv2 patches
        ],
        compiler_params=pltpu.CompilerParams(
            dimension_semantics=("parallel",)),
    )(mask, x.reshape(N, Ci, HW), hidden.reshape(N, Ch, HW), w1, b1, w2)
    return out.reshape(N, Ch, H, W)


def _reference(x, hidden, wg, bg, wc, bc):
    """Pure-JAX reference mirroring the PyTorch forward (NCHW / OIHW)."""
    Ch = wc.shape[0]
    dn = ('NCHW', 'OIHW', 'NCHW')
    prec = lax.Precision.HIGHEST
    c1 = lax.conv_general_dilated(jnp.concatenate([x, hidden], axis=1), wg,
                                  (1, 1), 'SAME', dimension_numbers=dn,
                                  precision=prec) + bg.reshape(1, -1, 1, 1)
    rt, ut = c1[:, :Ch], c1[:, Ch:]
    reset_gate = jax.nn.sigmoid(rt)
    update_gate = jax.nn.sigmoid(ut)
    gated_hidden = reset_gate * hidden
    p1 = lax.conv_general_dilated(jnp.concatenate([x, gated_hidden], axis=1),
                                  wc, (1, 1), 'SAME', dimension_numbers=dn,
                                  precision=prec) + bc.reshape(1, -1, 1, 1)
    ct = jnp.tanh(p1)
    return update_gate * hidden + (1.0 - update_gate) * ct


if __name__ == "__main__":
    # small shapes: batch=2, input channels=4, hidden channels=8, spatial=16
    N, Ci, Ch, H, W = 2, 4, 8, 16, 16
    key = jax.random.PRNGKey(0)
    kx, kh_, kwg, kbg, kwc, kbc = jax.random.split(key, 6)

    x = jax.random.normal(kx, (N, Ci, H, W), jnp.float32)
    hidden = jax.random.normal(kh_, (N, Ch, H, W), jnp.float32)

    # deterministic parameter init (shapes from the PyTorch module __init__, OIHW)
    wg = 0.1 * jax.random.normal(kwg, (2 * Ch, Ci + Ch, 3, 3), jnp.float32)
    bg = 0.1 * jax.random.normal(kbg, (2 * Ch,), jnp.float32)
    wc = 0.1 * jax.random.normal(kwc, (Ch, Ci + Ch, 3, 3), jnp.float32)
    bc = 0.1 * jax.random.normal(kbc, (Ch,), jnp.float32)

    out = jax.block_until_ready(conv_gru_cell(x, hidden, wg, bg, wc, bc))
    ref = _reference(x, hidden, wg, bg, wc, bc)

    assert out.shape == (N, Ch, H, W)
    err = float(jnp.max(jnp.abs(out - ref)))
    assert err < 1e-4, f"max abs err {err}"

    print("KERNEL_OK")
</pallas_src>

<mosaic_0001>
module attributes {stable_mosaic.version = 11 : i64} {
  func.func @_convgru_kernel(%arg0: i32, %arg1: memref<9x256xf32, #tpu.memory_space<vmem>>, %arg2: memref<1x4x256xf32, #tpu.memory_space<vmem>>, %arg3: memref<1x8x256xf32, #tpu.memory_space<vmem>>, %arg4: memref<24x144xf32, #tpu.memory_space<vmem>>, %arg5: memref<24x1xf32, #tpu.memory_space<vmem>>, %arg6: memref<8x72xf32, #tpu.memory_space<vmem>>, %arg7: memref<1x8x256xf32, #tpu.memory_space<vmem>>, %arg8: memref<144x256xf32, #tpu.memory_space<vmem>>, %arg9: memref<72x256xf32, #tpu.memory_space<vmem>>) attributes {dimension_semantics = [#tpu.dimension_semantics<parallel>], iteration_bounds = array<i64: 2>, scalar_prefetch = 0 : i64, scratch_operands = 2 : i64, tpu.core_type = #tpu.core_type<tc>, window_params = [{pipeline_mode = #tpu.pipeline_mode<synchronous>, transform_indices = @transform_0, window_bounds = array<i64: 9, 256>}, {transform_indices = @transform_1, window_bounds = array<i64: 1, 4, 256>}, {transform_indices = @transform_2, window_bounds = array<i64: 1, 8, 256>}, {pipeline_mode = #tpu.pipeline_mode<synchronous>, transform_indices = @transform_3, window_bounds = array<i64: 24, 144>}, {pipeline_mode = #tpu.pipeline_mode<synchronous>, transform_indices = @transform_4, window_bounds = array<i64: 24, 1>}, {pipeline_mode = #tpu.pipeline_mode<synchronous>, transform_indices = @transform_5, window_bounds = array<i64: 8, 72>}, {transform_indices = @transform_6, window_bounds = array<i64: 1, 8, 256>}]} {
    %c0 = arith.constant 0 : index
    %c0_0 = arith.constant 0 : index
    %0 = vector.load %arg1[%c0, %c0_0] : memref<9x256xf32, #tpu.memory_space<vmem>>, vector<9x256xf32>
    %cst = arith.constant 0.000000e+00 : f32
    %1 = vector.broadcast %cst : f32 to vector<9x256xf32>
    %2 = arith.cmpf one, %0, %1 : vector<9x256xf32>
    %c0_1 = arith.constant 0 : index
    %c0_2 = arith.constant 0 : index
    %c0_3 = arith.constant 0 : index
    %3 = vector.load %arg2[%c0_1, %c0_2, %c0_3] : memref<1x4x256xf32, #tpu.memory_space<vmem>>, vector<1x4x256xf32>
    %4 = vector.shape_cast %3 : vector<1x4x256xf32> to vector<4x256xf32>
    %c0_4 = arith.constant 0 : index
    %c0_5 = arith.constant 0 : index
    %c0_6 = arith.constant 0 : index
    %5 = vector.load %arg3[%c0_4, %c0_5, %c0_6] : memref<1x8x256xf32, #tpu.memory_space<vmem>>, vector<1x8x256xf32>
    %6 = vector.shape_cast %5 : vector<1x8x256xf32> to vector<8x256xf32>
    %cst_7 = arith.constant 0.000000e+00 : f32
    %7 = vector.broadcast %cst_7 : f32 to vector<4x256xf32>
    %8 = tpu.concatenate %4, %6, %7 in 0 : vector<4x256xf32>, vector<8x256xf32>, vector<4x256xf32> -> vector<16x256xf32>
    %c17_i32 = arith.constant 17 : i32
    %9 = tpu.dynamic_rotate %8 by %c17_i32 dim 1 : vector<16x256xf32>, i32 -> vector<16x256xf32>
    %10 = vector.extract_strided_slice %2 {offsets = [0, 0], sizes = [1, 256], strides = [1, 1]} : vector<9x256xi1> to vector<1x256xi1>
    %cst_8 = arith.constant 0.000000e+00 : f32
    %11 = vector.shape_cast %10 : vector<1x256xi1> to vector<1x256xi1>
    %12 = vector.broadcast %11 : vector<1x256xi1> to vector<16x256xi1>
    %13 = vector.broadcast %cst_8 : f32 to vector<16x256xf32>
    %14 = arith.select %12, %9, %13 : vector<16x256xi1>, vector<16x256xf32>
    %c0_9 = arith.constant 0 : index
    %c0_10 = arith.constant 0 : index
    %15 = vector.load %arg8[%c0_9, %c0_10] : memref<144x256xf32, #tpu.memory_space<vmem>>, vector<16x256xf32>
    tpu.vector_store %arg8[%c0_9, %c0_10], %14 {strides = array<i32>} : memref<144x256xf32, #tpu.memory_space<vmem>>, vector<16x256xf32>,
    %c16_i32 = arith.constant 16 : i32
    %16 = tpu.dynamic_rotate %8 by %c16_i32 dim 1 : vector<16x256xf32>, i32 -> vector<16x256xf32>
    %17 = vector.extract_strided_slice %2 {offsets = [1, 0], sizes = [1, 256], strides = [1, 1]} : vector<9x256xi1> to vector<1x256xi1>
    %cst_11 = arith.constant 0.000000e+00 : f32
    %18 = vector.shape_cast %17 : vector<1x256xi1> to vector<1x256xi1>
    %19 = vector.broadcast %18 : vector<1x256xi1> to vector<16x256xi1>
    %20 = vector.broadcast %cst_11 : f32 to vector<16x256xf32>
    %21 = arith.select %19, %16, %20 : vector<16x256xi1>, vector<16x256xf32>
    %c16 = arith.constant 16 : index
    %c0_12 = arith.constant 0 : index
    %22 = vector.load %arg8[%c16, %c0_12] : memref<144x256xf32, #tpu.memory_space<vmem>>, vector<16x256xf32>
    tpu.vector_store %arg8[%c16, %c0_12], %21 {strides = array<i32>} : memref<144x256xf32, #tpu.memory_space<vmem>>, vector<16x256xf32>,
    %c15_i32 = arith.constant 15 : i32
    %23 = tpu.dynamic_rotate %8 by %c15_i32 dim 1 : vector<16x256xf32>, i32 -> vector<16x256xf32>
    %24 = vector.extract_strided_slice %2 {offsets = [2, 0], sizes = [1, 256], strides = [1, 1]} : vector<9x256xi1> to vector<1x256xi1>
    %cst_13 = arith.constant 0.000000e+00 : f32
    %25 = vector.shape_cast %24 : vector<1x256xi1> to vector<1x256xi1>
    %26 = vector.broadcast %25 : vector<1x256xi1> to vector<16x256xi1>
    %27 = vector.broadcast %cst_13 : f32 to vector<16x256xf32>
    %28 = arith.select %26, %23, %27 : vector<16x256xi1>, vector<16x256xf32>
    %c32 = arith.constant 32 : index
    %c0_14 = arith.constant 0 : index
    %29 = vector.load %arg8[%c32, %c0_14] : memref<144x256xf32, #tpu.memory_space<vmem>>, vector<16x256xf32>
    tpu.vector_store %arg8[%c32, %c0_14], %28 {strides = array<i32>} : memref<144x256xf32, #tpu.memory_space<vmem>>, vector<16x256xf32>,
    %c1_i32 = arith.constant 1 : i32
    %30 = tpu.dynamic_rotate %8 by %c1_i32 dim 1 : vector<16x256xf32>, i32 -> vector<16x256xf32>
    %31 = vector.extract_strided_slice %2 {offsets = [3, 0], sizes = [1, 256], strides = [1, 1]} : vector<9x256xi1> to vector<1x256xi1>
    %cst_15 = arith.constant 0.000000e+00 : f32
    %32 = vector.shape_cast %31 : vector<1x256xi1> to vector<1x256xi1>
    %33 = vector.broadcast %32 : vector<1x256xi1> to vector<16x256xi1>
    %34 = vector.broadcast %cst_15 : f32 to vector<16x256xf32>
    %35 = arith.select %33, %30, %34 : vector<16x256xi1>, vector<16x256xf32>
    %c48 = arith.constant 48 : index
    %c0_16 = arith.constant 0 : index
    %36 = vector.load %arg8[%c48, %c0_16] : memref<144x256xf32, #tpu.memory_space<vmem>>, vector<16x256xf32>
    tpu.vector_store %arg8[%c48, %c0_16], %35 {strides = array<i32>} : memref<144x256xf32, #tpu.memory_space<vmem>>, vector<16x256xf32>,
    %37 = vector.extract_strided_slice %2 {offsets = [4, 0], sizes = [1, 256], strides = [1, 1]} : vector<9x256xi1> to vector<1x256xi1>
    %cst_17 = arith.constant 0.000000e+00 : f32
    %38 = vector.shape_cast %37 : vector<1x256xi1> to vector<1x256xi1>
    %39 = vector.broadcast %38 : vector<1x256xi1> to vector<16x256xi1>
    %40 = vector.broadcast %cst_17 : f32 to vector<16x256xf32>
    %41 = arith.select %39, %8, %40 : vector<16x256xi1>, vector<16x256xf32>
    %c64 = arith.constant 64 : index
    %c0_18 = arith.constant 0 : index
    %42 = vector.load %arg8[%c64, %c0_18] : memref<144x256xf32, #tpu.memory_space<vmem>>, vector<16x256xf32>
    tpu.vector_store %arg8[%c64, %c0_18], %41 {strides = array<i32>} : memref<144x256xf32, #tpu.memory_space<vmem>>, vector<16x256xf32>,
    %c255_i32 = arith.constant 255 : i32
    %43 = tpu.dynamic_rotate %8 by %c255_i32 dim 1 : vector<16x256xf32>, i32 -> vector<16x256xf32>
    %44 = vector.extract_strided_slice %2 {offsets = [5, 0], sizes = [1, 256], strides = [1, 1]} : vector<9x256xi1> to vector<1x256xi1>
    %cst_19 = arith.constant 0.000000e+00 : f32
    %45 = vector.shape_cast %44 : vector<1x256xi1> to vector<1x256xi1>
    %46 = vector.broadcast %45 : vector<1x256xi1> to vector<16x256xi1>
    %47 = vector.broadcast %cst_19 : f32 to vector<16x256xf32>
    %48 = arith.select %46, %43, %47 : vector<16x256xi1>, vector<16x256xf32>
    %c80 = arith.constant 80 : index
    %c0_20 = arith.constant 0 : index
    %49 = vector.load %arg8[%c80, %c0_20] : memref<144x256xf32, #tpu.memory_space<vmem>>, vector<16x256xf32>
    tpu.vector_store %arg8[%c80, %c0_20], %48 {strides = array<i32>} : memref<144x256xf32, #tpu.memory_space<vmem>>, vector<16x256xf32>,
    %c241_i32 = arith.constant 241 : i32
    %50 = tpu.dynamic_rotate %8 by %c241_i32 dim 1 : vector<16x256xf32>, i32 -> vector<16x256xf32>
    %51 = vector.extract_strided_slice %2 {offsets = [6, 0], sizes = [1, 256], strides = [1, 1]} : vector<9x256xi1> to vector<1x256xi1>
    %cst_21 = arith.constant 0.000000e+00 : f32
    %52 = vector.shape_cast %51 : vector<1x256xi1> to vector<1x256xi1>
    %53 = vector.broadcast %52 : vector<1x256xi1> to vector<16x256xi1>
    %54 = vector.broadcast %cst_21 : f32 to vector<16x256xf32>
    %55 = arith.select %53, %50, %54 : vector<16x256xi1>, vector<16x256xf32>
    %c96 = arith.constant 96 : index
    %c0_22 = arith.constant 0 : index
    %56 = vector.load %arg8[%c96, %c0_22] : memref<144x256xf32, #tpu.memory_space<vmem>>, vector<16x256xf32>
    tpu.vector_store %arg8[%c96, %c0_22], %55 {strides = array<i32>} : memref<144x256xf32, #tpu.memory_space<vmem>>, vector<16x256xf32>,
    %c240_i32 = arith.constant 240 : i32
    %57 = tpu.dynamic_rotate %8 by %c240_i32 dim 1 : vector<16x256xf32>, i32 -> vector<16x256xf32>
    %58 = vector.extract_strided_slice %2 {offsets = [7, 0], sizes = [1, 256], strides = [1, 1]} : vector<9x256xi1> to vector<1x256xi1>
    %cst_23 = arith.constant 0.000000e+00 : f32
    %59 = vector.shape_cast %58 : vector<1x256xi1> to vector<1x256xi1>
    %60 = vector.broadcast %59 : vector<1x256xi1> to vector<16x256xi1>
    %61 = vector.broadcast %cst_23 : f32 to vector<16x256xf32>
    %62 = arith.select %60, %57, %61 : vector<16x256xi1>, vector<16x256xf32>
    %c112 = arith.constant 112 : index
    %c0_24 = arith.constant 0 : index
    %63 = vector.load %arg8[%c112, %c0_24] : memref<144x256xf32, #tpu.memory_space<vmem>>, vector<16x256xf32>
    tpu.vector_store %arg8[%c112, %c0_24], %62 {strides = array<i32>} : memref<144x256xf32, #tpu.memory_space<vmem>>, vector<16x256xf32>,
    %c239_i32 = arith.constant 239 : i32
    %64 = tpu.dynamic_rotate %8 by %c239_i32 dim 1 : vector<16x256xf32>, i32 -> vector<16x256xf32>
    %65 = vector.extract_strided_slice %2 {offsets = [8, 0], sizes = [1, 256], strides = [1, 1]} : vector<9x256xi1> to vector<1x256xi1>
    %cst_25 = arith.constant 0.000000e+00 : f32
    %66 = vector.shape_cast %65 : vector<1x256xi1> to vector<1x256xi1>
    %67 = vector.broadcast %66 : vector<1x256xi1> to vector<16x256xi1>
    %68 = vector.broadcast %cst_25 : f32 to vector<16x256xf32>
    %69 = arith.select %67, %64, %68 : vector<16x256xi1>, vector<16x256xf32>
    %c128 = arith.constant 128 : index
    %c0_26 = arith.constant 0 : index
    %70 = vector.load %arg8[%c128, %c0_26] : memref<144x256xf32, #tpu.memory_space<vmem>>, vector<16x256xf32>
    tpu.vector_store %arg8[%c128, %c0_26], %69 {strides = array<i32>} : memref<144x256xf32, #tpu.memory_space<vmem>>, vector<16x256xf32>,
    %c0_27 = arith.constant 0 : index
    %c0_28 = arith.constant 0 : index
    %71 = vector.load %arg4[%c0_27, %c0_28] : memref<24x144xf32, #tpu.memory_space<vmem>>, vector<24x144xf32>
    %c0_29 = arith.constant 0 : index
    %c0_30 = arith.constant 0 : index
    %72 = vector.load %arg8[%c0_29, %c0_30] : memref<144x256xf32, #tpu.memory_space<vmem>>, vector<144x256xf32>
    %cst_31 = arith.constant dense<0.000000e+00> : vector<24x256xf32>
    %73 = tpu.matmul %71, %72, %cst_31 {dimension_numbers = #tpu.dot_dimension_numbers<[1], [0], [0], [1], [0, 0, 1, 1], [], []>} : vector<24x144xf32>, vector<144x256xf32>, vector<24x256xf32> -> vector<24x256xf32>
    %c0_32 = arith.constant 0 : index
    %c0_33 = arith.constant 0 : index
    %74 = vector.load %arg5[%c0_32, %c0_33] : memref<24x1xf32, #tpu.memory_space<vmem>>, vector<24x1xf32>
    %75 = vector.broadcast %74 : vector<24x1xf32> to vector<24x256xf32>
    %76 = arith.addf %73, %75 : vector<24x256xf32>
    %77 = vector.extract_strided_slice %76 {offsets = [0, 0], sizes = [8, 256], strides = [1, 1]} : vector<24x256xf32> to vector<8x256xf32>
    %78 = arith.negf %77 : vector<8x256xf32>
    %79 = math.exp %78 : vector<8x256xf32>
    %cst_34 = arith.constant 1.000000e+00 : f32
    %80 = vector.broadcast %cst_34 : f32 to vector<8x256xf32>
    %81 = arith.addf %80, %79 : vector<8x256xf32>
    %82 = arith.divf %80, %81 : vector<8x256xf32>
    %83 = vector.extract_strided_slice %76 {offsets = [8, 0], sizes = [8, 256], strides = [1, 1]} : vector<24x256xf32> to vector<8x256xf32>
    %84 = arith.negf %83 : vector<8x256xf32>
    %85 = math.exp %84 : vector<8x256xf32>
    %cst_35 = arith.constant 1.000000e+00 : f32
    %86 = vector.broadcast %cst_35 : f32 to vector<8x256xf32>
    %87 = arith.addf %86, %85 : vector<8x256xf32>
    %88 = arith.divf %86, %87 : vector<8x256xf32>
    %89 = vector.extract_strided_slice %76 {offsets = [16, 0], sizes = [8, 256], strides = [1, 1]} : vector<24x256xf32> to vector<8x256xf32>
    %c0_36 = arith.constant 0 : index
    %c0_37 = arith.constant 0 : index
    %c0_38 = arith.constant 0 : index
    %90 = vector.load %arg3[%c0_36, %c0_37, %c0_38] : memref<1x8x256xf32, #tpu.memory_space<vmem>>, vector<1x8x256xf32>
    %91 = vector.shape_cast %90 : vector<1x8x256xf32> to vector<8x256xf32>
    %92 = arith.mulf %82, %91 : vector<8x256xf32>
    %c17_i32_39 = arith.constant 17 : i32
    %93 = tpu.dynamic_rotate %92 by %c17_i32_39 dim 1 : vector<8x256xf32>, i32 -> vector<8x256xf32>
    %94 = vector.extract_strided_slice %2 {offsets = [0, 0], sizes = [1, 256], strides = [1, 1]} : vector<9x256xi1> to vector<1x256xi1>
    %cst_40 = arith.constant 0.000000e+00 : f32
    %95 = vector.shape_cast %94 : vector<1x256xi1> to vector<1x256xi1>
    %96 = vector.broadcast %95 : vector<1x256xi1> to vector<8x256xi1>
    %97 = vector.broadcast %cst_40 : f32 to vector<8x256xf32>
    %98 = arith.select %96, %93, %97 : vector<8x256xi1>, vector<8x256xf32>
    %c0_41 = arith.constant 0 : index
    %c0_42 = arith.constant 0 : index
    %99 = vector.load %arg9[%c0_41, %c0_42] : memref<72x256xf32, #tpu.memory_space<vmem>>, vector<8x256xf32>
    tpu.vector_store %arg9[%c0_41, %c0_42], %98 {strides = array<i32>} : memref<72x256xf32, #tpu.memory_space<vmem>>, vector<8x256xf32>,
    %c16_i32_43 = arith.constant 16 : i32
    %100 = tpu.dynamic_rotate %92 by %c16_i32_43 dim 1 : vector<8x256xf32>, i32 -> vector<8x256xf32>
    %101 = vector.extract_strided_slice %2 {offsets = [1, 0], sizes = [1, 256], strides = [1, 1]} : vector<9x256xi1> to vector<1x256xi1>
    %cst_44 = arith.constant 0.000000e+00 : f32
    %102 = vector.shape_cast %101 : vector<1x256xi1> to vector<1x256xi1>
    %103 = vector.broadcast %102 : vector<1x256xi1> to vector<8x256xi1>
    %104 = vector.broadcast %cst_44 : f32 to vector<8x256xf32>
    %105 = arith.select %103, %100, %104 : vector<8x256xi1>, vector<8x256xf32>
    %c8 = arith.constant 8 : index
    %c0_45 = arith.constant 0 : index
    %106 = vector.load %arg9[%c8, %c0_45] : memref<72x256xf32, #tpu.memory_space<vmem>>, vector<8x256xf32>
    tpu.vector_store %arg9[%c8, %c0_45], %105 {strides = array<i32>} : memref<72x256xf32, #tpu.memory_space<vmem>>, vector<8x256xf32>,
    %c15_i32_46 = arith.constant 15 : i32
    %107 = tpu.dynamic_rotate %92 by %c15_i32_46 dim 1 : vector<8x256xf32>, i32 -> vector<8x256xf32>
    %108 = vector.extract_strided_slice %2 {offsets = [2, 0], sizes = [1, 256], strides = [1, 1]} : vector<9x256xi1> to vector<1x256xi1>
    %cst_47 = arith.constant 0.000000e+00 : f32
    %109 = vector.shape_cast %108 : vector<1x256xi1> to vector<1x256xi1>
    %110 = vector.broadcast %109 : vector<1x256xi1> to vector<8x256xi1>
    %111 = vector.broadcast %cst_47 : f32 to vector<8x256xf32>
    %112 = arith.select %110, %107, %111 : vector<8x256xi1>, vector<8x256xf32>
    %c16_48 = arith.constant 16 : index
    %c0_49 = arith.constant 0 : index
    %113 = vector.load %arg9[%c16_48, %c0_49] : memref<72x256xf32, #tpu.memory_space<vmem>>, vector<8x256xf32>
    tpu.vector_store %arg9[%c16_48, %c0_49], %112 {strides = array<i32>} : memref<72x256xf32, #tpu.memory_space<vmem>>, vector<8x256xf32>,
    %c1_i32_50 = arith.constant 1 : i32
    %114 = tpu.dynamic_rotate %92 by %c1_i32_50 dim 1 : vector<8x256xf32>, i32 -> vector<8x256xf32>
    %115 = vector.extract_strided_slice %2 {offsets = [3, 0], sizes = [1, 256], strides = [1, 1]} : vector<9x256xi1> to vector<1x256xi1>
    %cst_51 = arith.constant 0.000000e+00 : f32
    %116 = vector.shape_cast %115 : vector<1x256xi1> to vector<1x256xi1>
    %117 = vector.broadcast %116 : vector<1x256xi1> to vector<8x256xi1>
    %118 = vector.broadcast %cst_51 : f32 to vector<8x256xf32>
    %119 = arith.select %117, %114, %118 : vector<8x256xi1>, vector<8x256xf32>
    %c24 = arith.constant 24 : index
    %c0_52 = arith.constant 0 : index
    %120 = vector.load %arg9[%c24, %c0_52] : memref<72x256xf32, #tpu.memory_space<vmem>>, vector<8x256xf32>
    tpu.vector_store %arg9[%c24, %c0_52], %119 {strides = array<i32>} : memref<72x256xf32, #tpu.memory_space<vmem>>, vector<8x256xf32>,
    %121 = vector.extract_strided_slice %2 {offsets = [4, 0], sizes = [1, 256], strides = [1, 1]} : vector<9x256xi1> to vector<1x256xi1>
    %cst_53 = arith.constant 0.000000e+00 : f32
    %122 = vector.shape_cast %121 : vector<1x256xi1> to vector<1x256xi1>
    %123 = vector.broadcast %122 : vector<1x256xi1> to vector<8x256xi1>
    %124 = vector.broadcast %cst_53 : f32 to vector<8x256xf32>
    %125 = arith.select %123, %92, %124 : vector<8x256xi1>, vector<8x256xf32>
    %c32_54 = arith.constant 32 : index
    %c0_55 = arith.constant 0 : index
    %126 = vector.load %arg9[%c32_54, %c0_55] : memref<72x256xf32, #tpu.memory_space<vmem>>, vector<8x256xf32>
    tpu.vector_store %arg9[%c32_54, %c0_55], %125 {strides = array<i32>} : memref<72x256xf32, #tpu.memory_space<vmem>>, vector<8x256xf32>,
    %c255_i32_56 = arith.constant 255 : i32
    %127 = tpu.dynamic_rotate %92 by %c255_i32_56 dim 1 : vector<8x256xf32>, i32 -> vector<8x256xf32>
    %128 = vector.extract_strided_slice %2 {offsets = [5, 0], sizes = [1, 256], strides = [1, 1]} : vector<9x256xi1> to vector<1x256xi1>
    %cst_57 = arith.constant 0.000000e+00 : f32
    %129 = vector.shape_cast %128 : vector<1x256xi1> to vector<1x256xi1>
    %130 = vector.broadcast %129 : vector<1x256xi1> to vector<8x256xi1>
    %131 = vector.broadcast %cst_57 : f32 to vector<8x256xf32>
    %132 = arith.select %130, %127, %131 : vector<8x256xi1>, vector<8x256xf32>
    %c40 = arith.constant 40 : index
    %c0_58 = arith.constant 0 : index
    %133 = vector.load %arg9[%c40, %c0_58] : memref<72x256xf32, #tpu.memory_space<vmem>>, vector<8x256xf32>
    tpu.vector_store %arg9[%c40, %c0_58], %132 {strides = array<i32>} : memref<72x256xf32, #tpu.memory_space<vmem>>, vector<8x256xf32>,
    %c241_i32_59 = arith.constant 241 : i32
    %134 = tpu.dynamic_rotate %92 by %c241_i32_59 dim 1 : vector<8x256xf32>, i32 -> vector<8x256xf32>
    %135 = vector.extract_strided_slice %2 {offsets = [6, 0], sizes = [1, 256], strides = [1, 1]} : vector<9x256xi1> to vector<1x256xi1>
    %cst_60 = arith.constant 0.000000e+00 : f32
    %136 = vector.shape_cast %135 : vector<1x256xi1> to vector<1x256xi1>
    %137 = vector.broadcast %136 : vector<1x256xi1> to vector<8x256xi1>
    %138 = vector.broadcast %cst_60 : f32 to vector<8x256xf32>
    %139 = arith.select %137, %134, %138 : vector<8x256xi1>, vector<8x256xf32>
    %c48_61 = arith.constant 48 : index
    %c0_62 = arith.constant 0 : index
    %140 = vector.load %arg9[%c48_61, %c0_62] : memref<72x256xf32, #tpu.memory_space<vmem>>, vector<8x256xf32>
    tpu.vector_store %arg9[%c48_61, %c0_62], %139 {strides = array<i32>} : memref<72x256xf32, #tpu.memory_space<vmem>>, vector<8x256xf32>,
    %c240_i32_63 = arith.constant 240 : i32
    %141 = tpu.dynamic_rotate %92 by %c240_i32_63 dim 1 : vector<8x256xf32>, i32 -> vector<8x256xf32>
    %142 = vector.extract_strided_slice %2 {offsets = [7, 0], sizes = [1, 256], strides = [1, 1]} : vector<9x256xi1> to vector<1x256xi1>
    %cst_64 = arith.constant 0.000000e+00 : f32
    %143 = vector.shape_cast %142 : vector<1x256xi1> to vector<1x256xi1>
    %144 = vector.broadcast %143 : vector<1x256xi1> to vector<8x256xi1>
    %145 = vector.broadcast %cst_64 : f32 to vector<8x256xf32>
    %146 = arith.select %144, %141, %145 : vector<8x256xi1>, vector<8x256xf32>
    %c56 = arith.constant 56 : index
    %c0_65 = arith.constant 0 : index
    %147 = vector.load %arg9[%c56, %c0_65] : memref<72x256xf32, #tpu.memory_space<vmem>>, vector<8x256xf32>
    tpu.vector_store %arg9[%c56, %c0_65], %146 {strides = array<i32>} : memref<72x256xf32, #tpu.memory_space<vmem>>, vector<8x256xf32>,
    %c239_i32_66 = arith.constant 239 : i32
    %148 = tpu.dynamic_rotate %92 by %c239_i32_66 dim 1 : vector<8x256xf32>, i32 -> vector<8x256xf32>
    %149 = vector.extract_strided_slice %2 {offsets = [8, 0], sizes = [1, 256], strides = [1, 1]} : vector<9x256xi1> to vector<1x256xi1>
    %cst_67 = arith.constant 0.000000e+00 : f32
    %150 = vector.shape_cast %149 : vector<1x256xi1> to vector<1x256xi1>
    %151 = vector.broadcast %150 : vector<1x256xi1> to vector<8x256xi1>
    %152 = vector.broadcast %cst_67 : f32 to vector<8x256xf32>
    %153 = arith.select %151, %148, %152 : vector<8x256xi1>, vector<8x256xf32>
    %c64_68 = arith.constant 64 : index
    %c0_69 = arith.constant 0 : index
    %154 = vector.load %arg9[%c64_68, %c0_69] : memref<72x256xf32, #tpu.memory_space<vmem>>, vector<8x256xf32>
    tpu.vector_store %arg9[%c64_68, %c0_69], %153 {strides = array<i32>} : memref<72x256xf32, #tpu.memory_space<vmem>>, vector<8x256xf32>,
    %c0_70 = arith.constant 0 : index
    %c0_71 = arith.constant 0 : index
    %155 = vector.load %arg6[%c0_70, %c0_71] : memref<8x72xf32, #tpu.memory_space<vmem>>, vector<8x72xf32>
    %c0_72 = arith.constant 0 : index
    %c0_73 = arith.constant 0 : index
    %156 = vector.load %arg9[%c0_72, %c0_73] : memref<72x256xf32, #tpu.memory_space<vmem>>, vector<72x256xf32>
    %cst_74 = arith.constant dense<0.000000e+00> : vector<8x256xf32>
    %157 = tpu.matmul %155, %156, %cst_74 {dimension_numbers = #tpu.dot_dimension_numbers<[1], [0], [0], [1], [0, 0, 1, 1], [], []>} : vector<8x72xf32>, vector<72x256xf32>, vector<8x256xf32> -> vector<8x256xf32>
    %158 = arith.addf %89, %157 : vector<8x256xf32>
    %159 = math.tanh %158 : vector<8x256xf32>
    %c0_75 = arith.constant 0 : index
    %c0_76 = arith.constant 0 : index
    %c0_77 = arith.constant 0 : index
    %160 = vector.load %arg3[%c0_75, %c0_76, %c0_77] : memref<1x8x256xf32, #tpu.memory_space<vmem>>, vector<1x8x256xf32>
    %161 = vector.shape_cast %160 : vector<1x8x256xf32> to vector<8x256xf32>
    %162 = arith.subf %161, %159 : vector<8x256xf32>
    %163 = arith.mulf %88, %162 : vector<8x256xf32>
    %164 = arith.addf %159, %163 : vector<8x256xf32>
    %c0_78 = arith.constant 0 : index
    %c0_79 = arith.constant 0 : index
    %c0_80 = arith.constant 0 : index
    %165 = vector.load %arg7[%c0_78, %c0_79, %c0_80] : memref<1x8x256xf32, #tpu.memory_space<vmem>>, vector<1x8x256xf32>
    %166 = vector.shape_cast %165 : vector<1x8x256xf32> to vector<8x256xf32>
    %167 = vector.shape_cast %164 : vector<8x256xf32> to vector<1x8x256xf32>
    tpu.vector_store %arg7[%c0_78, %c0_79, %c0_80], %167 {strides = array<i32>} : memref<1x8x256xf32, #tpu.memory_space<vmem>>, vector<1x8x256xf32>,
    return
  }
  func.func @transform_0(%arg0: i32) -> (i32, i32) {
    %c0_i32 = arith.constant 0 : i32
    %c0_i32_0 = arith.constant 0 : i32
    %c0_i32_1 = arith.constant 0 : i32
    return %c0_i32, %c0_i32_0 : i32, i32
  }
  func.func @transform_1(%arg0: i32) -> (i32, i32, i32) {
    %c0_i32 = arith.constant 0 : i32
    %c0_i32_0 = arith.constant 0 : i32
    %c0_i32_1 = arith.constant 0 : i32
    return %arg0, %c0_i32, %c0_i32_0 : i32, i32, i32
  }
  func.func @transform_2(%arg0: i32) -> (i32, i32, i32) {
    %c0_i32 = arith.constant 0 : i32
    %c0_i32_0 = arith.constant 0 : i32
    %c0_i32_1 = arith.constant 0 : i32
    return %arg0, %c0_i32, %c0_i32_0 : i32, i32, i32
  }
  func.func @transform_3(%arg0: i32) -> (i32, i32) {
    %c0_i32 = arith.constant 0 : i32
    %c0_i32_0 = arith.constant 0 : i32
    %c0_i32_1 = arith.constant 0 : i32
    return %c0_i32, %c0_i32_0 : i32, i32
  }
  func.func @transform_4(%arg0: i32) -> (i32, i32) {
    %c0_i32 = arith.constant 0 : i32
    %c0_i32_0 = arith.constant 0 : i32
    %c0_i32_1 = arith.constant 0 : i32
    return %c0_i32, %c0_i32_0 : i32, i32
  }
  func.func @transform_5(%arg0: i32) -> (i32, i32) {
    %c0_i32 = arith.constant 0 : i32
    %c0_i32_0 = arith.constant 0 : i32
    %c0_i32_1 = arith.constant 0 : i32
    return %c0_i32, %c0_i32_0 : i32, i32
  }
  func.func @transform_6(%arg0: i32) -> (i32, i32, i32) {
    %c0_i32 = arith.constant 0 : i32
    %c0_i32_0 = arith.constant 0 : i32
    %c0_i32_1 = arith.constant 0 : i32
    return %arg0, %c0_i32, %c0_i32_0 : i32, i32, i32
  }
}

</mosaic_0001>

<llo_original>
// kernel: tpu_custom_call.1
$region0: #{tpu_custom_call.1}
  #allocation0 [shape = 'u32[]', space=smem, size = 0x4, offset = 0x4, fixed_abs, tag = 'smem constant byte address 0x4 - core index']
  #allocation1 [shape = 'u32[144,128]{1,0:T(1,128)}', space=vmem, size = 0x12000, scoped, tag = 'internal scratch']
  #allocation2 [shape = 'f32[144,256]{1,0:T(8,128)}', space=vmem, size = 0x24000, scoped, tag = 'scratch operand']
  #allocation3 [shape = 'f32[72,256]{1,0:T(8,128)}', space=vmem, size = 0x12000, scoped, tag = 'scratch operand']
  %s0 = inlined_call_operand.hbm [shape: f32[9,256], index: 0, kind: input, shape index: {}]
  %s1 = inlined_call_operand.vmem [shape: f32[2,4,256], index: 1, kind: input, shape index: {}]
  %s2 = inlined_call_operand.hbm [shape: f32[2,8,256], index: 2, kind: input, shape index: {}]
  %s3 = inlined_call_operand.hbm [shape: f32[24,144], index: 3, kind: input, shape index: {}]
  %s4 = inlined_call_operand.vmem [shape: f32[24,1], index: 4, kind: input, shape index: {}]
  %s5 = inlined_call_operand.vmem [shape: f32[8,72], index: 5, kind: input, shape index: {}]
  %s6 = inlined_call_operand.hbm [shape: f32[2,8,256], index: 6, kind: output, shape index: {}]
  %s7 = sld [smem:[#allocation0]]
  $region69: #{tpu_custom_call.1} parent=0
    _
  %s9 = ssub.s32 1, %s7
  %s10 = scalar_select 0, %s9, %s7
  $region1: #{tpu_custom_call.1} parent=0
    #allocation4 [shape = 'u8[16384]{0}', space=vmem, size = 0x4000, scoped, tag = 'input window, operand 0, single buffered']
    #allocation5 [shape = 's32[2]{0}', space=sflag, size = 0x8, scoped, tag = 'scoped memory for tpu_custom_call.1']
    #allocation6 [shape = 's32[2]{0}', space=sflag, size = 0x8, scoped, tag = 'scoped memory for tpu_custom_call.1']
    #allocation7 [shape = 'u8[16384]{0}', space=vmem, size = 0x4000, scoped, tag = 'input window, operand 2']
    #allocation8 [shape = 's32[2]{0}', space=sflag, size = 0x8, scoped, tag = 'scoped memory for tpu_custom_call.1']
    #allocation9 [shape = 'u8[24576]{0}', space=vmem, size = 0x6000, scoped, tag = 'input window, operand 3, single buffered']
    #allocation10 [shape = 'u8[16384]{0}', space=vmem, size = 0x4000, scoped, tag = 'output window, operand 0']
    %11 = vsyncpa [#allocation5], 0
    %12 = vsyncpa [#allocation8], 0
    %s13 = scalar_lea.sflag [#allocation8], 1
    %14 = vsyncpa %s13, 0
    %15 = vsyncpa [#allocation6], 0
    %s16 = scalar_lea.sflag [#allocation6], 1
    %17 = vsyncpa %s16, 0
    loop: start=0, step=1, limit=4
    $region2: #{tpu_custom_call.1} parent=1 // loop_pre_header
      _
    $region3: #{tpu_custom_call.1} parent=1 // loop_header
      %s19 = sphi 0, %s23
      %p20 = scmp.ge.s32.totalorder %s19, 4
      %s27 = sphi 0, %s27
      %s29 = sphi 0, %s27
      %s30 = sphi 0, %s29
      %s44 = sphi 0, %s30
      %s50 = sphi 0, %s52
      %s53 = sphi 0, %s50
      %s54 = sphi 0, %s53
      %s70 = sphi 0, %s54
      %s76 = sphi 0, %s78
      %s79 = sphi 0, %s76
      %s80 = sphi 0, %s79
      %s96 = sphi 0, %s80
      %s100 = sphi 0, %s100
      %s102 = sphi 0, %s100
      %s103 = sphi 0, %s102
      %s117 = sphi 0, %s103
      %s121 = sphi 0, %s121
      %s123 = sphi 0, %s121
      %s124 = sphi 0, %s123
      %s138 = sphi 0, %s124
      %s142 = sphi 0, %s142
      %s144 = sphi 0, %s142
      %s145 = sphi 0, %s144
      %s159 = sphi 0, %s145
      %s165 = sphi 0, %s167
      %s168 = sphi 0, %s165
      %s169 = sphi 0, %s168
      %s185 = sphi 0, %s169
    $region4: #{tpu_custom_call.1} parent=1 // loop_header_branch
      %22 = sbr.rel (%p20) target = $region8
    $region5: #{tpu_custom_call.1} parent=1 // loop_body
      %s24 = ssub.s32 %s19, 1
      %s25 = ssub.s32 %s19, 2
      %s26 = sadd.s32 %s19, 1
      %s28 = sadd.s32 %s27, 1
      %p31 = scmp.eq.s32.totalorder %s19, 1
      %p32 = scmp.ne.s32.totalorder %s27, %s29
      %p33 = scmp.eq.s32.totalorder %s19, 0
      %p34 = por %p32, %p33
      %p35 = scmp.ne.s32.totalorder %s27, %s29
      %p36 = scmp.eq.s32.totalorder %s24, 1
      %p37 = por %p35, %p36
      %p38 = scmp.ne.s32.totalorder %s29, %s30
      %p39 = scmp.eq.s32.totalorder %s24, 0
      %p40 = por %p38, %p39
      %p41 = scmp.ne.s32.totalorder %s29, %s30
      %p42 = scmp.eq.s32.totalorder %s25, 1
      %p43 = por %p41, %p42
      %p45 = scmp.ne.s32.totalorder %s30, %s44
      %p46 = scmp.eq.s32.totalorder %s25, 0
      %p47 = por %p45, %p46
      %s48 = ssub.s32 %s19, %s26
      %p49 = scmp.eq.s32.totalorder %s48, 0
      %s51 = sadd.s32 %s50, 1
      %s52 = scalar_select %p49, %s50, %s51
      %p55 = pneg %p49
      %p56 = scmp.eq.s32.totalorder %s19, 1
      %p57 = por %p55, %p56
      %p58 = scmp.ne.s32.totalorder %s50, %s53
      %p59 = scmp.eq.s32.totalorder %s19, 0
      %p60 = por %p58, %p59
      %p61 = scmp.ne.s32.totalorder %s50, %s53
      %p62 = scmp.eq.s32.totalorder %s24, 1
      %p63 = por %p61, %p62
      %p64 = scmp.ne.s32.totalorder %s53, %s54
      %p65 = scmp.eq.s32.totalorder %s24, 0
      %p66 = por %p64, %p65
      %p67 = scmp.ne.s32.totalorder %s53, %s54
      %p68 = scmp.eq.s32.totalorder %s25, 1
      %p69 = por %p67, %p68
      %p71 = scmp.ne.s32.totalorder %s54, %s70
      %p72 = scmp.eq.s32.totalorder %s25, 0
      %p73 = por %p71, %p72
      %s74 = ssub.s32 %s19, %s26
      %p75 = scmp.eq.s32.totalorder %s74, 0
      %s77 = sadd.s32 %s76, 1
      %s78 = scalar_select %p75, %s76, %s77
      %p81 = pneg %p75
      %p82 = scmp.eq.s32.totalorder %s19, 1
      %p83 = por %p81, %p82
      %p84 = scmp.ne.s32.totalorder %s76, %s79
      %p85 = scmp.eq.s32.totalorder %s19, 0
      %p86 = por %p84, %p85
      %p87 = scmp.ne.s32.totalorder %s76, %s79
      %p88 = scmp.eq.s32.totalorder %s24, 1
      %p89 = por %p87, %p88
      %p90 = scmp.ne.s32.totalorder %s79, %s80
      %p91 = scmp.eq.s32.totalorder %s24, 0
      %p92 = por %p90, %p91
      %p93 = scmp.ne.s32.totalorder %s79, %s80
      %p94 = scmp.eq.s32.totalorder %s25, 1
      %p95 = por %p93, %p94
      %p97 = scmp.ne.s32.totalorder %s80, %s96
      %p98 = scmp.eq.s32.totalorder %s25, 0
      %p99 = por %p97, %p98
      %s101 = sadd.s32 %s100, 1
      %p104 = scmp.eq.s32.totalorder %s19, 1
      %p105 = scmp.ne.s32.totalorder %s100, %s102
      %p106 = scmp.eq.s32.totalorder %s19, 0
      %p107 = por %p105, %p106
      %p108 = scmp.ne.s32.totalorder %s100, %s102
      %p109 = scmp.eq.s32.totalorder %s24, 1
      %p110 = por %p108, %p109
      %p111 = scmp.ne.s32.totalorder %s102, %s103
      %p112 = scmp.eq.s32.totalorder %s24, 0
      %p113 = por %p111, %p112
      %p114 = scmp.ne.s32.totalorder %s102, %s103
      %p115 = scmp.eq.s32.totalorder %s25, 1
      %p116 = por %p114, %p115
      %p118 = scmp.ne.s32.totalorder %s103, %s117
      %p119 = scmp.eq.s32.totalorder %s25, 0
      %p120 = por %p118, %p119
      %s122 = sadd.s32 %s121, 1
      %p125 = scmp.eq.s32.totalorder %s19, 1
      %p126 = scmp.ne.s32.totalorder %s121, %s123
      %p127 = scmp.eq.s32.totalorder %s19, 0
      %p128 = por %p126, %p127
      %p129 = scmp.ne.s32.totalorder %s121, %s123
      %p130 = scmp.eq.s32.totalorder %s24, 1
      %p131 = por %p129, %p130
      %p132 = scmp.ne.s32.totalorder %s123, %s124
      %p133 = scmp.eq.s32.totalorder %s24, 0
      %p134 = por %p132, %p133
      %p135 = scmp.ne.s32.totalorder %s123, %s124
      %p136 = scmp.eq.s32.totalorder %s25, 1
      %p137 = por %p135, %p136
      %p139 = scmp.ne.s32.totalorder %s124, %s138
      %p140 = scmp.eq.s32.totalorder %s25, 0
      %p141 = por %p139, %p140
      %s143 = sadd.s32 %s142, 1
      %p146 = scmp.eq.s32.totalorder %s19, 1
      %p147 = scmp.ne.s32.totalorder %s142, %s144
      %p148 = scmp.eq.s32.totalorder %s19, 0
      %p149 = por %p147, %p148
      %p150 = scmp.ne.s32.totalorder %s142, %s144
      %p151 = scmp.eq.s32.totalorder %s24, 1
      %p152 = por %p150, %p151
      %p153 = scmp.ne.s32.totalorder %s144, %s145
      %p154 = scmp.eq.s32.totalorder %s24, 0
      %p155 = por %p153, %p154
      %p156 = scmp.ne.s32.totalorder %s144, %s145
      %p157 = scmp.eq.s32.totalorder %s25, 1
      %p158 = por %p156, %p157
      %p160 = scmp.ne.s32.totalorder %s145, %s159
      %p161 = scmp.eq.s32.totalorder %s25, 0
      %p162 = por %p160, %p161
      %s163 = ssub.s32 %s19, %s26
      %p164 = scmp.eq.s32.totalorder %s163, 0
      %s166 = sadd.s32 %s165, 1
      %s167 = scalar_select %p164, %s165, %s166
      %p170 = pneg %p164
      %p171 = scmp.eq.s32.totalorder %s19, 1
      %p172 = por %p170, %p171
      %p173 = scmp.ne.s32.totalorder %s165, %s168
      %p174 = scmp.eq.s32.totalorder %s19, 0
      %p175 = por %p173, %p174
      %p176 = scmp.ne.s32.totalorder %s165, %s168
      %p177 = scmp.eq.s32.totalorder %s24, 1
      %p178 = por %p176, %p177
      %p179 = scmp.ne.s32.totalorder %s168, %s169
      %p180 = scmp.eq.s32.totalorder %s24, 0
      %p181 = por %p179, %p180
      %p182 = scmp.ne.s32.totalorder %s168, %s169
      %p183 = scmp.eq.s32.totalorder %s25, 1
      %p184 = por %p182, %p183
      %p186 = scmp.ne.s32.totalorder %s169, %s185
      %p187 = scmp.eq.s32.totalorder %s25, 0
      %p188 = por %p186, %p187
      %p189 = scmp.le.s32.totalorder 1, %s19
      %p190 = scmp.lt.s32.totalorder %s19, 3
      %p191 = pnand %p189, %p190
      %p192 = pneg %p191
      // Predicated region
      $region9: #{tpu_custom_call.1} parent=5 // pred_check
        _
      $region10: #{tpu_custom_call.1} parent=5 // pred_check_branch
        %194 = sbr.rel (%p191) target = $region12
      $region11: #{tpu_custom_call.1} parent=5 // pred_region
        %s195 = ssub.s32 %s19, 1
        // Predicated region
        $region13: #{tpu_custom_call.1} parent=11 // pred_check
          %p196 = pneg %p40
        $region14: #{tpu_custom_call.1} parent=11 // pred_check_branch
          %198 = sbr.rel (%p196) target = $region16
        $region15: #{tpu_custom_call.1} parent=11 // pred_region
          %s200 = ssub.s32 512, 512
          %201 = vsyncadd [#allocation5], %s200
          %s202 = sshll.u32 [#allocation4], 4
          %s203 = int_to_ptr.vmem [resolvable:$true] %s202
          %208 = dma.hbm_to_vmem [thread:$0]  %s0, 512, %s203, [#allocation5], 256, 256, 16
        $region16: #{tpu_custom_call.1} parent=11 // pred_fallthru
          _
        // Predicated region
        $region17: #{tpu_custom_call.1} parent=11 // pred_check
          %p209 = pneg %p113
        $region18: #{tpu_custom_call.1} parent=11 // pred_check_branch
          %211 = sbr.rel (%p209) target = $region20
        $region19: #{tpu_custom_call.1} parent=11 // pred_region
          %s213 = ssub.s32 768, 768
          %214 = vsyncadd [#allocation8], %s213
          %s215 = sshll.u32 [#allocation9], 4
          %s216 = int_to_ptr.vmem [resolvable:$true] %s215
          %221 = dma.hbm_to_vmem [thread:$0]  %s3, 768, %s216, [#allocation8], 256, 256, 16
        $region20: #{tpu_custom_call.1} parent=11 // pred_fallthru
          _
        // Predicated region
        $region21: #{tpu_custom_call.1} parent=11 // pred_check
          %p222 = pneg %p134
        $region22: #{tpu_custom_call.1} parent=11 // pred_check_branch
          %224 = sbr.rel (%p222) target = $region24
        $region23: #{tpu_custom_call.1} parent=11 // pred_region
          _
        $region24: #{tpu_custom_call.1} parent=11 // pred_fallthru
          _
        // Predicated region
        $region25: #{tpu_custom_call.1} parent=11 // pred_check
          %p225 = pneg %p155
        $region26: #{tpu_custom_call.1} parent=11 // pred_check_branch
          %227 = sbr.rel (%p225) target = $region28
        $region27: #{tpu_custom_call.1} parent=11 // pred_region
          _
        $region28: #{tpu_custom_call.1} parent=11 // pred_fallthru
          _
      $region12: #{tpu_custom_call.1} parent=5 // pred_fallthru
        _
      %p228 = scmp.lt.s32.totalorder %s19, 2
      // Predicated region
      $region29: #{tpu_custom_call.1} parent=5 // pred_check
        %p229 = pneg %p228
      $region30: #{tpu_custom_call.1} parent=5 // pred_check_branch
        %231 = sbr.rel (%p229) target = $region32
      $region31: #{tpu_custom_call.1} parent=5 // pred_region
        // Predicated region
        $region33: #{tpu_custom_call.1} parent=31 // pred_check
          %p232 = pneg %p60
        $region34: #{tpu_custom_call.1} parent=31 // pred_check_branch
          %234 = sbr.rel (%p232) target = $region36
        $region35: #{tpu_custom_call.1} parent=31 // pred_region
          %p235 = scmp.lt.s32.totalorder %s19, 1
          %s236 = scalar_select %p235, %s19, 1
          %s237 = smul.addr %s236, 2
          %s238 = smul.addr %s237, 4
          %s239 = scalar_lea.vmem %s1, %s238
        $region36: #{tpu_custom_call.1} parent=31 // pred_fallthru
          _
        // Predicated region
        $region37: #{tpu_custom_call.1} parent=31 // pred_check
          %p240 = pneg %p86
        $region38: #{tpu_custom_call.1} parent=31 // pred_check_branch
          %242 = sbr.rel (%p240) target = $region40
        $region39: #{tpu_custom_call.1} parent=31 // pred_region
          %s243 = sand.u32 %s19, 1
          %s244 = scalar_lea.sflag [#allocation8], %s243
          %s245 = sand.u32 %s76, 1
          %s246 = smul.addr %s245, 16
          %s247 = scalar_lea.vmem [#allocation7], %s246
          %s249 = ssub.s32 256, 256
          %250 = vsyncadd %s244, %s249
          %s251 = smul.addr %s19, 2
          %s252 = smul.addr %s251, 128
          %s253 = scalar_lea.hbm %s2, %s252
          %s255 = sshll.u32 %s247, 4
          %s256 = int_to_ptr.vmem [resolvable:$true] %s255
          %258 = dma.hbm_to_vmem [thread:$0]  %s253, 256, %s256, %s244
        $region40: #{tpu_custom_call.1} parent=31 // pred_fallthru
          _
      $region32: #{tpu_custom_call.1} parent=5 // pred_fallthru
        _
      %p259 = scmp.le.s32.totalorder 1, %s19
      %p260 = scmp.lt.s32.totalorder %s19, 3
      %p261 = pnand %p259, %p260
      %p262 = pneg %p261
      // Predicated region
      $region41: #{tpu_custom_call.1} parent=5 // pred_check
        _
      $region42: #{tpu_custom_call.1} parent=5 // pred_check_branch
        %264 = sbr.rel (%p261) target = $region44
      $region43: #{tpu_custom_call.1} parent=5 // pred_region
        %s265 = ssub.s32 %s19, 1
        // Predicated region
        $region45: #{tpu_custom_call.1} parent=43 // pred_check
          %p266 = pneg %p40
        $region46: #{tpu_custom_call.1} parent=43 // pred_check_branch
          %268 = sbr.rel (%p266) target = $region48
        $region47: #{tpu_custom_call.1} parent=43 // pred_region
          %269 = dma.done [#allocation5], 512
        $region48: #{tpu_custom_call.1} parent=43 // pred_fallthru
          _
        %s270 = sand.u32 %s24, 1
        %s271 = scalar_lea.sflag [#allocation8], %s270
        %s272 = sand.u32 %s79, 1
        %s273 = smul.addr %s272, 16
        %s274 = scalar_lea.vmem [#allocation7], %s273
        // Predicated region
        $region49: #{tpu_custom_call.1} parent=43 // pred_check
          %p275 = pneg %p92
        $region50: #{tpu_custom_call.1} parent=43 // pred_check_branch
          %277 = sbr.rel (%p275) target = $region52
        $region51: #{tpu_custom_call.1} parent=43 // pred_region
          %278 = dma.done %s271, 256
        $region52: #{tpu_custom_call.1} parent=43 // pred_fallthru
          _
        // Predicated region
        $region53: #{tpu_custom_call.1} parent=43 // pred_check
          %p279 = pneg %p113
        $region54: #{tpu_custom_call.1} parent=43 // pred_check_branch
          %281 = sbr.rel (%p279) target = $region56
        $region55: #{tpu_custom_call.1} parent=43 // pred_region
          %282 = dma.done [#allocation8], 768
        $region56: #{tpu_custom_call.1} parent=43 // pred_fallthru
          _
        %p283 = pneg %p40
        %p284 = pneg %p37
        %p285 = scmp.lt.s32.totalorder %s24, 1
        %s286 = scalar_select %p285, %s24, 1
        %s287 = smul.addr %s286, 2
        %s288 = smul.addr %s287, 4
        %s289 = scalar_lea.vmem %s1, %s288
        %p290 = pneg %p66
        %p291 = pneg %p63
        %s292 = sand.u32 %s24, 1
        %s293 = scalar_lea.sflag [#allocation8], %s292
        %s294 = sand.u32 %s79, 1
        %s295 = smul.addr %s294, 16
        %s296 = scalar_lea.vmem [#allocation7], %s295
        %p297 = pneg %p92
        %p298 = pneg %p89
        %p299 = pneg %p113
        %p300 = pneg %p110
        %p301 = pneg %p134
        %p302 = pneg %p131
        %p303 = pneg %p155
        %p304 = pneg %p152
        %p305 = pneg %p181
        %p306 = pneg %p178
        %s307 = sand.u32 %s168, 1
        %s308 = scalar_lea.sflag [#allocation6], %s307
        %s309 = sand.u32 %s168, 1
        %s310 = smul.addr %s309, 16
        %s311 = scalar_lea.vmem [#allocation10], %s310
        %p312 = scmp.lt.s32.totalorder %s24, 1
        %s313 = scalar_select %p312, %s24, 1
        %s314 = smul.addr %s313, 2
        %s315 = smul.addr %s314, 4
        %s316 = scalar_lea.vmem %s1, %s315
        %v317 = vld [vmem:[#allocation4] sm:$0xff]
        %v318 = vld [vmem:[#allocation4 + $0x8] sm:$0xff]
        %v319 = vld [vmem:[#allocation4 + $0x10] sm:$0x1]
        %v320 = vld [vmem:[#allocation4 + $0x18] sm:$0x1]
        %vm321 = vcmp.ne.f32.partialorder %v317, 0.0
        %vm322 = vcmp.ne.f32.partialorder %v318, 0.0
        %vm323 = vcmp.ne.f32.partialorder %v319, 0.0
        %vm324 = vcmp.ne.f32.partialorder %v320, 0.0
        %v325 = vld [vmem:[%s316] sm:$0xff]
        %v326 = vld [vmem:[%s274] sm:$0xff]
        %v327 = vld [vmem:[%s274 + $0x8] sm:$0xff]
        %v329 = vcombine.high %v325, %v325
        %v333 = vrot.slane %v326, 4
        %v334 = vrot.slane %v327, 4
        %vm337 = vcmask 1043456
        %v338 = vsel %vm337, %v325, %v333
        %v339 = vsel %vm337, %v329, %v334
        %v340 = vsel %vm337, %v333, 0.0
        %v341 = vsel %vm337, %v334, 0.0
        %342 = vrot.lane.b32.xlu0 %v338, 17
        %v343 = vpop.permute.xlu0 %342
        %344 = vrot.lane.b32.xlu0 %v340, 17
        %v345 = vpop.permute.xlu0 %344
        %346 = vrot.lane.b32.xlu0 %v339, 17
        %v347 = vpop.permute.xlu0 %346
        %348 = vrot.lane.b32.xlu0 %v341, 17
        %v349 = vpop.permute.xlu0 %348
        %v350 = vlaneseq
        %v351 = vand.u32 %v350, 127
        %vm352 = vcmp.lt.s32.totalorder %v351, 17
        %v353 = vsel %vm352, %v343, %v347
        %v354 = vsel %vm352, %v345, %v349
        %v355 = vsel %vm352, %v347, %v343
        %v356 = vsel %vm352, %v349, %v345
        %v357 = vsel %vm321, 1, 0
        %v358 = vsel %vm322, 1, 0
        %vm359 = vcmp.eq.s32.totalorder %v357, 1
        %vm360 = vcmp.eq.s32.totalorder %v358, 1
        %v365 = vrot.slane %v355, 1
        %v366 = vrot.slane %v353, 1
        %v367 = vrot.slane %v355, 2
        %v368 = vrot.slane %v353, 2
        %v369 = vrot.slane %v355, 3
        %v370 = vrot.slane %v353, 3
        %v371 = vrot.slane %v355, 4
        %v372 = vrot.slane %v353, 4
        %v373 = vrot.slane %v355, 5
        %v374 = vrot.slane %v353, 5
        %v375 = vrot.slane %v355, 6
        %v376 = vrot.slane %v353, 6
        %v377 = vrot.slane %v355, 7
        %v378 = vrot.slane %v353, 7
        %v379 = vrot.slane %v356, 1
        %v380 = vrot.slane %v354, 1
        %v381 = vrot.slane %v356, 2
        %v382 = vrot.slane %v354, 2
        %v383 = vrot.slane %v356, 3
        %v384 = vrot.slane %v354, 3
        %v385 = vrot.slane %v356, 4
        %v386 = vrot.slane %v354, 4
        %v387 = vrot.slane %v356, 5
        %v388 = vrot.slane %v354, 5
        %v389 = vrot.slane %v356, 6
        %v390 = vrot.slane %v354, 6
        %v391 = vrot.slane %v356, 7
        %v392 = vrot.slane %v354, 7
        %v425 = vsel %vm359, %v355, 0.0
        %v426 = vsel %vm360, %v353, 0.0
        %v427 = vsel %vm359, %v365, 0.0
        %v428 = vsel %vm360, %v366, 0.0
        %v429 = vsel %vm359, %v367, 0.0
        %v430 = vsel %vm360, %v368, 0.0
        %v431 = vsel %vm359, %v369, 0.0
        %v432 = vsel %vm360, %v370, 0.0
        %v433 = vsel %vm359, %v371, 0.0
        %v434 = vsel %vm360, %v372, 0.0
        %v435 = vsel %vm359, %v373, 0.0
        %v436 = vsel %vm360, %v374, 0.0
        %v437 = vsel %vm359, %v375, 0.0
        %v438 = vsel %vm360, %v376, 0.0
        %v439 = vsel %vm359, %v377, 0.0
        %v440 = vsel %vm360, %v378, 0.0
        %v441 = vsel %vm359, %v356, 0.0
        %v442 = vsel %vm360, %v354, 0.0
        %v443 = vsel %vm359, %v379, 0.0
        %v444 = vsel %vm360, %v380, 0.0
        %v445 = vsel %vm359, %v381, 0.0
        %v446 = vsel %vm360, %v382, 0.0
        %v447 = vsel %vm359, %v383, 0.0
        %v448 = vsel %vm360, %v384, 0.0
        %v449 = vsel %vm359, %v385, 0.0
        %v450 = vsel %vm360, %v386, 0.0
        %v451 = vsel %vm359, %v387, 0.0
        %v452 = vsel %vm360, %v388, 0.0
        %v453 = vsel %vm359, %v389, 0.0
        %v454 = vsel %vm360, %v390, 0.0
        %v455 = vsel %vm359, %v391, 0.0
        %v456 = vsel %vm360, %v392, 0.0
        %v489 = vrot.slane %v427, 7
        %vm490 = vcmask 1041409
        %v491 = vsel %vm490, %v489, %v425
        %v492 = vrot.slane %v429, 6
        %vm493 = vcmask 1042434
        %v494 = vsel %vm493, %v492, %v491
        %v495 = vrot.slane %v431, 5
        %vm496 = vcmask 1043459
        %v497 = vsel %vm496, %v495, %v494
        %v498 = vrot.slane %v433, 4
        %vm499 = vcmask 1044484
        %v500 = vsel %vm499, %v498, %v497
        %v501 = vrot.slane %v435, 3
        %vm502 = vcmask 1045509
        %v503 = vsel %vm502, %v501, %v500
        %v504 = vrot.slane %v437, 2
        %vm505 = vcmask 1046534
        %v506 = vsel %vm505, %v504, %v503
        %v507 = vrot.slane %v439, 1
        %vm508 = vcmask 1047559
        %v509 = vsel %vm508, %v507, %v506
        %v510 = vrot.slane %v428, 7
        %v511 = vsel %vm490, %v510, %v426
        %v512 = vrot.slane %v430, 6
        %v513 = vsel %vm493, %v512, %v511
        %v514 = vrot.slane %v432, 5
        %v515 = vsel %vm496, %v514, %v513
        %v516 = vrot.slane %v434, 4
        %v517 = vsel %vm499, %v516, %v515
        %v518 = vrot.slane %v436, 3
        %v519 = vsel %vm502, %v518, %v517
        %v520 = vrot.slane %v438, 2
        %v521 = vsel %vm505, %v520, %v519
        %v522 = vrot.slane %v440, 1
        %v523 = vsel %vm508, %v522, %v521
        %v524 = vrot.slane %v443, 7
        %v525 = vsel %vm490, %v524, %v441
        %v526 = vrot.slane %v445, 6
        %v527 = vsel %vm493, %v526, %v525
        %v528 = vrot.slane %v447, 5
        %v529 = vsel %vm496, %v528, %v527
        %v530 = vrot.slane %v449, 4
        %v531 = vsel %vm499, %v530, %v529
        %v532 = vrot.slane %v451, 3
        %v533 = vsel %vm502, %v532, %v531
        %v534 = vrot.slane %v453, 2
        %v535 = vsel %vm505, %v534, %v533
        %v536 = vrot.slane %v455, 1
        %v537 = vsel %vm508, %v536, %v535
        %v538 = vrot.slane %v444, 7
        %v539 = vsel %vm490, %v538, %v442
        %v540 = vrot.slane %v446, 6
        %v541 = vsel %vm493, %v540, %v539
        %v542 = vrot.slane %v448, 5
        %v543 = vsel %vm496, %v542, %v541
        %v544 = vrot.slane %v450, 4
        %v545 = vsel %vm499, %v544, %v543
        %v546 = vrot.slane %v452, 3
        %v547 = vsel %vm502, %v546, %v545
        %v548 = vrot.slane %v454, 2
        %v549 = vsel %vm505, %v548, %v547
        %v550 = vrot.slane %v456, 1
        %v551 = vsel %vm508, %v550, %v549
        %556 = vst [vmem:[#allocation2] sm:$0xff] %v509
        %557 = vst [vmem:[#allocation2 + $0x8] sm:$0xff] %v523
        %558 = vst [vmem:[#allocation2 + $0x10] sm:$0xff] %v537
        %559 = vst [vmem:[#allocation2 + $0x18] sm:$0xff] %v551
        %560 = vrot.lane.b32.xlu0 %v338, 16
        %v561 = vpop.permute.xlu0 %560
        %562 = vrot.lane.b32.xlu0 %v340, 16
        %v563 = vpop.permute.xlu0 %562
        %564 = vrot.lane.b32.xlu0 %v339, 16
        %v565 = vpop.permute.xlu0 %564
        %566 = vrot.lane.b32.xlu0 %v341, 16
        %v567 = vpop.permute.xlu0 %566
        %vm568 = vcmp.lt.s32.totalorder %v351, 16
        %v569 = vsel %vm568, %v561, %v565
        %v570 = vsel %vm568, %v563, %v567
        %v571 = vsel %vm568, %v565, %v561
        %v572 = vsel %vm568, %v567, %v563
        %v577 = vrot.slane %v571, 7
        %v578 = vrot.slane %v569, 7
        %v579 = vrot.slane %v571, 1
        %v580 = vrot.slane %v569, 1
        %v581 = vrot.slane %v571, 2
        %v582 = vrot.slane %v569, 2
        %v583 = vrot.slane %v571, 3
        %v584 = vrot.slane %v569, 3
        %v585 = vrot.slane %v571, 4
        %v586 = vrot.slane %v569, 4
        %v587 = vrot.slane %v571, 5
        %v588 = vrot.slane %v569, 5
        %v589 = vrot.slane %v571, 6
        %v590 = vrot.slane %v569, 6
        %v591 = vrot.slane %v572, 7
        %v592 = vrot.slane %v570, 7
        %v593 = vrot.slane %v572, 1
        %v594 = vrot.slane %v570, 1
        %v595 = vrot.slane %v572, 2
        %v596 = vrot.slane %v570, 2
        %v597 = vrot.slane %v572, 3
        %v598 = vrot.slane %v570, 3
        %v599 = vrot.slane %v572, 4
        %v600 = vrot.slane %v570, 4
        %v601 = vrot.slane %v572, 5
        %v602 = vrot.slane %v570, 5
        %v603 = vrot.slane %v572, 6
        %v604 = vrot.slane %v570, 6
        %v637 = vsel %vm359, %v577, 0.0
        %v638 = vsel %vm360, %v578, 0.0
        %v639 = vsel %vm359, %v571, 0.0
        %v640 = vsel %vm360, %v569, 0.0
        %v641 = vsel %vm359, %v579, 0.0
        %v642 = vsel %vm360, %v580, 0.0
        %v643 = vsel %vm359, %v581, 0.0
        %v644 = vsel %vm360, %v582, 0.0
        %v645 = vsel %vm359, %v583, 0.0
        %v646 = vsel %vm360, %v584, 0.0
        %v647 = vsel %vm359, %v585, 0.0
        %v648 = vsel %vm360, %v586, 0.0
        %v649 = vsel %vm359, %v587, 0.0
        %v650 = vsel %vm360, %v588, 0.0
        %v651 = vsel %vm359, %v589, 0.0
        %v652 = vsel %vm360, %v590, 0.0
        %v653 = vsel %vm359, %v591, 0.0
        %v654 = vsel %vm360, %v592, 0.0
        %v655 = vsel %vm359, %v572, 0.0
        %v656 = vsel %vm360, %v570, 0.0
        %v657 = vsel %vm359, %v593, 0.0
        %v658 = vsel %vm360, %v594, 0.0
        %v659 = vsel %vm359, %v595, 0.0
        %v660 = vsel %vm360, %v596, 0.0
        %v661 = vsel %vm359, %v597, 0.0
        %v662 = vsel %vm360, %v598, 0.0
        %v663 = vsel %vm359, %v599, 0.0
        %v664 = vsel %vm360, %v600, 0.0
        %v665 = vsel %vm359, %v601, 0.0
        %v666 = vsel %vm360, %v602, 0.0
        %v667 = vsel %vm359, %v603, 0.0
        %v668 = vsel %vm360, %v604, 0.0
        %v701 = vrot.slane %v637, 1
        %v702 = vsel %vm490, %v639, %v701
        %v703 = vrot.slane %v641, 7
        %v704 = vsel %vm493, %v703, %v702
        %v705 = vrot.slane %v643, 6
        %v706 = vsel %vm496, %v705, %v704
        %v707 = vrot.slane %v645, 5
        %v708 = vsel %vm499, %v707, %v706
        %v709 = vrot.slane %v647, 4
        %v710 = vsel %vm502, %v709, %v708
        %v711 = vrot.slane %v649, 3
        %v712 = vsel %vm505, %v711, %v710
        %v713 = vrot.slane %v651, 2
        %v714 = vsel %vm508, %v713, %v712
        %v715 = vrot.slane %v638, 1
        %v716 = vsel %vm490, %v640, %v715
        %v717 = vrot.slane %v642, 7
        %v718 = vsel %vm493, %v717, %v716
        %v719 = vrot.slane %v644, 6
        %v720 = vsel %vm496, %v719, %v718
        %v721 = vrot.slane %v646, 5
        %v722 = vsel %vm499, %v721, %v720
        %v723 = vrot.slane %v648, 4
        %v724 = vsel %vm502, %v723, %v722
        %v725 = vrot.slane %v650, 3
        %v726 = vsel %vm505, %v725, %v724
        %v727 = vrot.slane %v652, 2
        %v728 = vsel %vm508, %v727, %v726
        %v729 = vrot.slane %v653, 1
        %v730 = vsel %vm490, %v655, %v729
        %v731 = vrot.slane %v657, 7
        %v732 = vsel %vm493, %v731, %v730
        %v733 = vrot.slane %v659, 6
        %v734 = vsel %vm496, %v733, %v732
        %v735 = vrot.slane %v661, 5
        %v736 = vsel %vm499, %v735, %v734
        %v737 = vrot.slane %v663, 4
        %v738 = vsel %vm502, %v737, %v736
        %v739 = vrot.slane %v665, 3
        %v740 = vsel %vm505, %v739, %v738
        %v741 = vrot.slane %v667, 2
        %v742 = vsel %vm508, %v741, %v740
        %v743 = vrot.slane %v654, 1
        %v744 = vsel %vm490, %v656, %v743
        %v745 = vrot.slane %v658, 7
        %v746 = vsel %vm493, %v745, %v744
        %v747 = vrot.slane %v660, 6
        %v748 = vsel %vm496, %v747, %v746
        %v749 = vrot.slane %v662, 5
        %v750 = vsel %vm499, %v749, %v748
        %v751 = vrot.slane %v664, 4
        %v752 = vsel %vm502, %v751, %v750
        %v753 = vrot.slane %v666, 3
        %v754 = vsel %vm505, %v753, %v752
        %v755 = vrot.slane %v668, 2
        %v756 = vsel %vm508, %v755, %v754
        %761 = vst [vmem:[#allocation2 + $0x20] sm:$0xff] %v714
        %762 = vst [vmem:[#allocation2 + $0x28] sm:$0xff] %v728
        %763 = vst [vmem:[#allocation2 + $0x30] sm:$0xff] %v742
        %764 = vst [vmem:[#allocation2 + $0x38] sm:$0xff] %v756
        %765 = vrot.lane.b32.xlu0 %v338, 15
        %v766 = vpop.permute.xlu0 %765
        %767 = vrot.lane.b32.xlu0 %v340, 15
        %v768 = vpop.permute.xlu0 %767
        %769 = vrot.lane.b32.xlu0 %v339, 15
        %v770 = vpop.permute.xlu0 %769
        %771 = vrot.lane.b32.xlu0 %v341, 15
        %v772 = vpop.permute.xlu0 %771
        %vm773 = vcmp.lt.s32.totalorder %v351, 15
        %v774 = vsel %vm773, %v766, %v770
        %v775 = vsel %vm773, %v768, %v772
        %v776 = vsel %vm773, %v770, %v766
        %v777 = vsel %vm773, %v772, %v768
        %v782 = vrot.slane %v776, 6
        %v783 = vrot.slane %v774, 6
        %v784 = vrot.slane %v776, 7
        %v785 = vrot.slane %v774, 7
        %v786 = vrot.slane %v776, 1
        %v787 = vrot.slane %v774, 1
        %v788 = vrot.slane %v776, 2
        %v789 = vrot.slane %v774, 2
        %v790 = vrot.slane %v776, 3
        %v791 = vrot.slane %v774, 3
        %v792 = vrot.slane %v776, 4
        %v793 = vrot.slane %v774, 4
        %v794 = vrot.slane %v776, 5
        %v795 = vrot.slane %v774, 5
        %v796 = vrot.slane %v777, 6
        %v797 = vrot.slane %v775, 6
        %v798 = vrot.slane %v777, 7
        %v799 = vrot.slane %v775, 7
        %v800 = vrot.slane %v777, 1
        %v801 = vrot.slane %v775, 1
        %v802 = vrot.slane %v777, 2
        %v803 = vrot.slane %v775, 2
        %v804 = vrot.slane %v777, 3
        %v805 = vrot.slane %v775, 3
        %v806 = vrot.slane %v777, 4
        %v807 = vrot.slane %v775, 4
        %v808 = vrot.slane %v777, 5
        %v809 = vrot.slane %v775, 5
        %v842 = vsel %vm359, %v782, 0.0
        %v843 = vsel %vm360, %v783, 0.0
        %v844 = vsel %vm359, %v784, 0.0
        %v845 = vsel %vm360, %v785, 0.0
        %v846 = vsel %vm359, %v776, 0.0
        %v847 = vsel %vm360, %v774, 0.0
        %v848 = vsel %vm359, %v786, 0.0
        %v849 = vsel %vm360, %v787, 0.0
        %v850 = vsel %vm359, %v788, 0.0
        %v851 = vsel %vm360, %v789, 0.0
        %v852 = vsel %vm359, %v790, 0.0
        %v853 = vsel %vm360, %v791, 0.0
        %v854 = vsel %vm359, %v792, 0.0
        %v855 = vsel %vm360, %v793, 0.0
        %v856 = vsel %vm359, %v794, 0.0
        %v857 = vsel %vm360, %v795, 0.0
        %v858 = vsel %vm359, %v796, 0.0
        %v859 = vsel %vm360, %v797, 0.0
        %v860 = vsel %vm359, %v798, 0.0
        %v861 = vsel %vm360, %v799, 0.0
        %v862 = vsel %vm359, %v777, 0.0
        %v863 = vsel %vm360, %v775, 0.0
        %v864 = vsel %vm359, %v800, 0.0
        %v865 = vsel %vm360, %v801, 0.0
        %v866 = vsel %vm359, %v802, 0.0
        %v867 = vsel %vm360, %v803, 0.0
        %v868 = vsel %vm359, %v804, 0.0
        %v869 = vsel %vm360, %v805, 0.0
        %v870 = vsel %vm359, %v806, 0.0
        %v871 = vsel %vm360, %v807, 0.0
        %v872 = vsel %vm359, %v808, 0.0
        %v873 = vsel %vm360, %v809, 0.0
        %v906 = vrot.slane %v842, 2
        %v907 = vrot.slane %v844, 1
        %v908 = vsel %vm490, %v907, %v906
        %v909 = vsel %vm493, %v846, %v908
        %v910 = vrot.slane %v848, 7
        %v911 = vsel %vm496, %v910, %v909
        %v912 = vrot.slane %v850, 6
        %v913 = vsel %vm499, %v912, %v911
        %v914 = vrot.slane %v852, 5
        %v915 = vsel %vm502, %v914, %v913
        %v916 = vrot.slane %v854, 4
        %v917 = vsel %vm505, %v916, %v915
        %v918 = vrot.slane %v856, 3
        %v919 = vsel %vm508, %v918, %v917
        %v920 = vrot.slane %v843, 2
        %v921 = vrot.slane %v845, 1
        %v922 = vsel %vm490, %v921, %v920
        %v923 = vsel %vm493, %v847, %v922
        %v924 = vrot.slane %v849, 7
        %v925 = vsel %vm496, %v924, %v923
        %v926 = vrot.slane %v851, 6
        %v927 = vsel %vm499, %v926, %v925
        %v928 = vrot.slane %v853, 5
        %v929 = vsel %vm502, %v928, %v927
        %v930 = vrot.slane %v855, 4
        %v931 = vsel %vm505, %v930, %v929
        %v932 = vrot.slane %v857, 3
        %v933 = vsel %vm508, %v932, %v931
        %v934 = vrot.slane %v858, 2
        %v935 = vrot.slane %v860, 1
        %v936 = vsel %vm490, %v935, %v934
        %v937 = vsel %vm493, %v862, %v936
        %v938 = vrot.slane %v864, 7
        %v939 = vsel %vm496, %v938, %v937
        %v940 = vrot.slane %v866, 6
        %v941 = vsel %vm499, %v940, %v939
        %v942 = vrot.slane %v868, 5
        %v943 = vsel %vm502, %v942, %v941
        %v944 = vrot.slane %v870, 4
        %v945 = vsel %vm505, %v944, %v943
        %v946 = vrot.slane %v872, 3
        %v947 = vsel %vm508, %v946, %v945
        %v948 = vrot.slane %v859, 2
        %v949 = vrot.slane %v861, 1
        %v950 = vsel %vm490, %v949, %v948
        %v951 = vsel %vm493, %v863, %v950
        %v952 = vrot.slane %v865, 7
        %v953 = vsel %vm496, %v952, %v951
        %v954 = vrot.slane %v867, 6
        %v955 = vsel %vm499, %v954, %v953
        %v956 = vrot.slane %v869, 5
        %v957 = vsel %vm502, %v956, %v955
        %v958 = vrot.slane %v871, 4
        %v959 = vsel %vm505, %v958, %v957
        %v960 = vrot.slane %v873, 3
        %v961 = vsel %vm508, %v960, %v959
        %966 = vst [vmem:[#allocation2 + $0x40] sm:$0xff] %v919
        %967 = vst [vmem:[#allocation2 + $0x48] sm:$0xff] %v933
        %968 = vst [vmem:[#allocation2 + $0x50] sm:$0xff] %v947
        %969 = vst [vmem:[#allocation2 + $0x58] sm:$0xff] %v961
        %970 = vrot.lane.b32.xlu0 %v338, 1
        %v971 = vpop.permute.xlu0 %970
        %972 = vrot.lane.b32.xlu0 %v340, 1
        %v973 = vpop.permute.xlu0 %972
        %974 = vrot.lane.b32.xlu0 %v339, 1
        %v975 = vpop.permute.xlu0 %974
        %976 = vrot.lane.b32.xlu0 %v341, 1
        %v977 = vpop.permute.xlu0 %976
        %vm978 = vcmp.lt.s32.totalorder %v351, 1
        %v979 = vsel %vm978, %v971, %v975
        %v980 = vsel %vm978, %v973, %v977
        %v981 = vsel %vm978, %v975, %v971
        %v982 = vsel %vm978, %v977, %v973
        %v987 = vrot.slane %v981, 5
        %v988 = vrot.slane %v979, 5
        %v989 = vrot.slane %v981, 6
        %v990 = vrot.slane %v979, 6
        %v991 = vrot.slane %v981, 7
        %v992 = vrot.slane %v979, 7
        %v993 = vrot.slane %v981, 1
        %v994 = vrot.slane %v979, 1
        %v995 = vrot.slane %v981, 2
        %v996 = vrot.slane %v979, 2
        %v997 = vrot.slane %v981, 3
        %v998 = vrot.slane %v979, 3
        %v999 = vrot.slane %v981, 4
        %v1000 = vrot.slane %v979, 4
        %v1001 = vrot.slane %v982, 5
        %v1002 = vrot.slane %v980, 5
        %v1003 = vrot.slane %v982, 6
        %v1004 = vrot.slane %v980, 6
        %v1005 = vrot.slane %v982, 7
        %v1006 = vrot.slane %v980, 7
        %v1007 = vrot.slane %v982, 1
        %v1008 = vrot.slane %v980, 1
        %v1009 = vrot.slane %v982, 2
        %v1010 = vrot.slane %v980, 2
        %v1011 = vrot.slane %v982, 3
        %v1012 = vrot.slane %v980, 3
        %v1013 = vrot.slane %v982, 4
        %v1014 = vrot.slane %v980, 4
        %v1047 = vsel %vm359, %v987, 0.0
        %v1048 = vsel %vm360, %v988, 0.0
        %v1049 = vsel %vm359, %v989, 0.0
        %v1050 = vsel %vm360, %v990, 0.0
        %v1051 = vsel %vm359, %v991, 0.0
        %v1052 = vsel %vm360, %v992, 0.0
        %v1053 = vsel %vm359, %v981, 0.0
        %v1054 = vsel %vm360, %v979, 0.0
        %v1055 = vsel %vm359, %v993, 0.0
        %v1056 = vsel %vm360, %v994, 0.0
        %v1057 = vsel %vm359, %v995, 0.0
        %v1058 = vsel %vm360, %v996, 0.0
        %v1059 = vsel %vm359, %v997, 0.0
        %v1060 = vsel %vm360, %v998, 0.0
        %v1061 = vsel %vm359, %v999, 0.0
        %v1062 = vsel %vm360, %v1000, 0.0
        %v1063 = vsel %vm359, %v1001, 0.0
        %v1064 = vsel %vm360, %v1002, 0.0
        %v1065 = vsel %vm359, %v1003, 0.0
        %v1066 = vsel %vm360, %v1004, 0.0
        %v1067 = vsel %vm359, %v1005, 0.0
        %v1068 = vsel %vm360, %v1006, 0.0
        %v1069 = vsel %vm359, %v982, 0.0
        %v1070 = vsel %vm360, %v980, 0.0
        %v1071 = vsel %vm359, %v1007, 0.0
        %v1072 = vsel %vm360, %v1008, 0.0
        %v1073 = vsel %vm359, %v1009, 0.0
        %v1074 = vsel %vm360, %v1010, 0.0
        %v1075 = vsel %vm359, %v1011, 0.0
        %v1076 = vsel %vm360, %v1012, 0.0
        %v1077 = vsel %vm359, %v1013, 0.0
        %v1078 = vsel %vm360, %v1014, 0.0
        %v1111 = vrot.slane %v1047, 3
        %v1112 = vrot.slane %v1049, 2
        %v1113 = vsel %vm490, %v1112, %v1111
        %v1114 = vrot.slane %v1051, 1
        %v1115 = vsel %vm493, %v1114, %v1113
        %v1116 = vsel %vm496, %v1053, %v1115
        %v1117 = vrot.slane %v1055, 7
        %v1118 = vsel %vm499, %v1117, %v1116
        %v1119 = vrot.slane %v1057, 6
        %v1120 = vsel %vm502, %v1119, %v1118
        %v1121 = vrot.slane %v1059, 5
        %v1122 = vsel %vm505, %v1121, %v1120
        %v1123 = vrot.slane %v1061, 4
        %v1124 = vsel %vm508, %v1123, %v1122
        %v1125 = vrot.slane %v1048, 3
        %v1126 = vrot.slane %v1050, 2
        %v1127 = vsel %vm490, %v1126, %v1125
        %v1128 = vrot.slane %v1052, 1
        %v1129 = vsel %vm493, %v1128, %v1127
        %v1130 = vsel %vm496, %v1054, %v1129
        %v1131 = vrot.slane %v1056, 7
        %v1132 = vsel %vm499, %v1131, %v1130
        %v1133 = vrot.slane %v1058, 6
        %v1134 = vsel %vm502, %v1133, %v1132
        %v1135 = vrot.slane %v1060, 5
        %v1136 = vsel %vm505, %v1135, %v1134
        %v1137 = vrot.slane %v1062, 4
        %v1138 = vsel %vm508, %v1137, %v1136
        %v1139 = vrot.slane %v1063, 3
        %v1140 = vrot.slane %v1065, 2
        %v1141 = vsel %vm490, %v1140, %v1139
        %v1142 = vrot.slane %v1067, 1
        %v1143 = vsel %vm493, %v1142, %v1141
        %v1144 = vsel %vm496, %v1069, %v1143
        %v1145 = vrot.slane %v1071, 7
        %v1146 = vsel %vm499, %v1145, %v1144
        %v1147 = vrot.slane %v1073, 6
        %v1148 = vsel %vm502, %v1147, %v1146
        %v1149 = vrot.slane %v1075, 5
        %v1150 = vsel %vm505, %v1149, %v1148
        %v1151 = vrot.slane %v1077, 4
        %v1152 = vsel %vm508, %v1151, %v1150
        %v1153 = vrot.slane %v1064, 3
        %v1154 = vrot.slane %v1066, 2
        %v1155 = vsel %vm490, %v1154, %v1153
        %v1156 = vrot.slane %v1068, 1
        %v1157 = vsel %vm493, %v1156, %v1155
        %v1158 = vsel %vm496, %v1070, %v1157
        %v1159 = vrot.slane %v1072, 7
        %v1160 = vsel %vm499, %v1159, %v1158
        %v1161 = vrot.slane %v1074, 6
        %v1162 = vsel %vm502, %v1161, %v1160
        %v1163 = vrot.slane %v1076, 5
        %v1164 = vsel %vm505, %v1163, %v1162
        %v1165 = vrot.slane %v1078, 4
        %v1166 = vsel %vm508, %v1165, %v1164
        %1171 = vst [vmem:[#allocation2 + $0x60] sm:$0xff] %v1124
        %1172 = vst [vmem:[#allocation2 + $0x68] sm:$0xff] %v1138
        %1173 = vst [vmem:[#allocation2 + $0x70] sm:$0xff] %v1152
        %1174 = vst [vmem:[#allocation2 + $0x78] sm:$0xff] %v1166
        %v1179 = vrot.slane %v338, 4
        %v1180 = vrot.slane %v339, 4
        %v1181 = vrot.slane %v338, 5
        %v1182 = vrot.slane %v339, 5
        %v1183 = vrot.slane %v338, 6
        %v1184 = vrot.slane %v339, 6
        %v1185 = vrot.slane %v338, 7
        %v1186 = vrot.slane %v339, 7
        %v1187 = vrot.slane %v338, 1
        %v1188 = vrot.slane %v339, 1
        %v1189 = vrot.slane %v338, 2
        %v1190 = vrot.slane %v339, 2
        %v1191 = vrot.slane %v338, 3
        %v1192 = vrot.slane %v339, 3
        %v1193 = vrot.slane %v340, 4
        %v1194 = vrot.slane %v341, 4
        %v1195 = vrot.slane %v340, 5
        %v1196 = vrot.slane %v341, 5
        %v1197 = vrot.slane %v340, 6
        %v1198 = vrot.slane %v341, 6
        %v1199 = vrot.slane %v340, 7
        %v1200 = vrot.slane %v341, 7
        %v1201 = vrot.slane %v340, 1
        %v1202 = vrot.slane %v341, 1
        %v1203 = vrot.slane %v340, 2
        %v1204 = vrot.slane %v341, 2
        %v1205 = vrot.slane %v340, 3
        %v1206 = vrot.slane %v341, 3
        %v1239 = vsel %vm359, %v1179, 0.0
        %v1240 = vsel %vm360, %v1180, 0.0
        %v1241 = vsel %vm359, %v1181, 0.0
        %v1242 = vsel %vm360, %v1182, 0.0
        %v1243 = vsel %vm359, %v1183, 0.0
        %v1244 = vsel %vm360, %v1184, 0.0
        %v1245 = vsel %vm359, %v1185, 0.0
        %v1246 = vsel %vm360, %v1186, 0.0
        %v1247 = vsel %vm359, %v338, 0.0
        %v1248 = vsel %vm360, %v339, 0.0
        %v1249 = vsel %vm359, %v1187, 0.0
        %v1250 = vsel %vm360, %v1188, 0.0
        %v1251 = vsel %vm359, %v1189, 0.0
        %v1252 = vsel %vm360, %v1190, 0.0
        %v1253 = vsel %vm359, %v1191, 0.0
        %v1254 = vsel %vm360, %v1192, 0.0
        %v1255 = vsel %vm359, %v1193, 0.0
        %v1256 = vsel %vm360, %v1194, 0.0
        %v1257 = vsel %vm359, %v1195, 0.0
        %v1258 = vsel %vm360, %v1196, 0.0
        %v1259 = vsel %vm359, %v1197, 0.0
        %v1260 = vsel %vm360, %v1198, 0.0
        %v1261 = vsel %vm359, %v1199, 0.0
        %v1262 = vsel %vm360, %v1200, 0.0
        %v1263 = vsel %vm359, %v340, 0.0
        %v1264 = vsel %vm360, %v341, 0.0
        %v1265 = vsel %vm359, %v1201, 0.0
        %v1266 = vsel %vm360, %v1202, 0.0
        %v1267 = vsel %vm359, %v1203, 0.0
        %v1268 = vsel %vm360, %v1204, 0.0
        %v1269 = vsel %vm359, %v1205, 0.0
        %v1270 = vsel %vm360, %v1206, 0.0
        %v1303 = vrot.slane %v1239, 4
        %v1304 = vrot.slane %v1241, 3
        %v1305 = vsel %vm490, %v1304, %v1303
        %v1306 = vrot.slane %v1243, 2
        %v1307 = vsel %vm493, %v1306, %v1305
        %v1308 = vrot.slane %v1245, 1
        %v1309 = vsel %vm496, %v1308, %v1307
        %v1310 = vsel %vm499, %v1247, %v1309
        %v1311 = vrot.slane %v1249, 7
        %v1312 = vsel %vm502, %v1311, %v1310
        %v1313 = vrot.slane %v1251, 6
        %v1314 = vsel %vm505, %v1313, %v1312
        %v1315 = vrot.slane %v1253, 5
        %v1316 = vsel %vm508, %v1315, %v1314
        %v1317 = vrot.slane %v1240, 4
        %v1318 = vrot.slane %v1242, 3
        %v1319 = vsel %vm490, %v1318, %v1317
        %v1320 = vrot.slane %v1244, 2
        %v1321 = vsel %vm493, %v1320, %v1319
        %v1322 = vrot.slane %v1246, 1
        %v1323 = vsel %vm496, %v1322, %v1321
        %v1324 = vsel %vm499, %v1248, %v1323
        %v1325 = vrot.slane %v1250, 7
        %v1326 = vsel %vm502, %v1325, %v1324
        %v1327 = vrot.slane %v1252, 6
        %v1328 = vsel %vm505, %v1327, %v1326
        %v1329 = vrot.slane %v1254, 5
        %v1330 = vsel %vm508, %v1329, %v1328
        %v1331 = vrot.slane %v1255, 4
        %v1332 = vrot.slane %v1257, 3
        %v1333 = vsel %vm490, %v1332, %v1331
        %v1334 = vrot.slane %v1259, 2
        %v1335 = vsel %vm493, %v1334, %v1333
        %v1336 = vrot.slane %v1261, 1
        %v1337 = vsel %vm496, %v1336, %v1335
        %v1338 = vsel %vm499, %v1263, %v1337
        %v1339 = vrot.slane %v1265, 7
        %v1340 = vsel %vm502, %v1339, %v1338
        %v1341 = vrot.slane %v1267, 6
        %v1342 = vsel %vm505, %v1341, %v1340
        %v1343 = vrot.slane %v1269, 5
        %v1344 = vsel %vm508, %v1343, %v1342
        %v1345 = vrot.slane %v1256, 4
        %v1346 = vrot.slane %v1258, 3
        %v1347 = vsel %vm490, %v1346, %v1345
        %v1348 = vrot.slane %v1260, 2
        %v1349 = vsel %vm493, %v1348, %v1347
        %v1350 = vrot.slane %v1262, 1
        %v1351 = vsel %vm496, %v1350, %v1349
        %v1352 = vsel %vm499, %v1264, %v1351
        %v1353 = vrot.slane %v1266, 7
        %v1354 = vsel %vm502, %v1353, %v1352
        %v1355 = vrot.slane %v1268, 6
        %v1356 = vsel %vm505, %v1355, %v1354
        %v1357 = vrot.slane %v1270, 5
        %v1358 = vsel %vm508, %v1357, %v1356
        %1363 = vst [vmem:[#allocation2 + $0x80] sm:$0xff] %v1316
        %1364 = vst [vmem:[#allocation2 + $0x88] sm:$0xff] %v1330
        %1365 = vst [vmem:[#allocation2 + $0x90] sm:$0xff] %v1344
        %1366 = vst [vmem:[#allocation2 + $0x98] sm:$0xff] %v1358
        %1367 = vrot.lane.b32.xlu0 %v338, 127
        %v1368 = vpop.permute.xlu0 %1367
        %1369 = vrot.lane.b32.xlu0 %v340, 127
        %v1370 = vpop.permute.xlu0 %1369
        %1371 = vrot.lane.b32.xlu0 %v339, 127
        %v1372 = vpop.permute.xlu0 %1371
        %1373 = vrot.lane.b32.xlu0 %v341, 127
        %v1374 = vpop.permute.xlu0 %1373
        %vm1375 = vcmp.lt.s32.totalorder %v351, 127
        %v1376 = vsel %vm1375, %v1368, %v1372
        %v1377 = vsel %vm1375, %v1370, %v1374
        %v1378 = vsel %vm1375, %v1372, %v1368
        %v1379 = vsel %vm1375, %v1374, %v1370
        %v1384 = vrot.slane %v1376, 3
        %v1385 = vrot.slane %v1378, 3
        %v1386 = vrot.slane %v1376, 4
        %v1387 = vrot.slane %v1378, 4
        %v1388 = vrot.slane %v1376, 5
        %v1389 = vrot.slane %v1378, 5
        %v1390 = vrot.slane %v1376, 6
        %v1391 = vrot.slane %v1378, 6
        %v1392 = vrot.slane %v1376, 7
        %v1393 = vrot.slane %v1378, 7
        %v1394 = vrot.slane %v1376, 1
        %v1395 = vrot.slane %v1378, 1
        %v1396 = vrot.slane %v1376, 2
        %v1397 = vrot.slane %v1378, 2
        %v1398 = vrot.slane %v1377, 3
        %v1399 = vrot.slane %v1379, 3
        %v1400 = vrot.slane %v1377, 4
        %v1401 = vrot.slane %v1379, 4
        %v1402 = vrot.slane %v1377, 5
        %v1403 = vrot.slane %v1379, 5
        %v1404 = vrot.slane %v1377, 6
        %v1405 = vrot.slane %v1379, 6
        %v1406 = vrot.slane %v1377, 7
        %v1407 = vrot.slane %v1379, 7
        %v1408 = vrot.slane %v1377, 1
        %v1409 = vrot.slane %v1379, 1
        %v1410 = vrot.slane %v1377, 2
        %v1411 = vrot.slane %v1379, 2
        %v1444 = vsel %vm359, %v1384, 0.0
        %v1445 = vsel %vm360, %v1385, 0.0
        %v1446 = vsel %vm359, %v1386, 0.0
        %v1447 = vsel %vm360, %v1387, 0.0
        %v1448 = vsel %vm359, %v1388, 0.0
        %v1449 = vsel %vm360, %v1389, 0.0
        %v1450 = vsel %vm359, %v1390, 0.0
        %v1451 = vsel %vm360, %v1391, 0.0
        %v1452 = vsel %vm359, %v1392, 0.0
        %v1453 = vsel %vm360, %v1393, 0.0
        %v1454 = vsel %vm359, %v1376, 0.0
        %v1455 = vsel %vm360, %v1378, 0.0
        %v1456 = vsel %vm359, %v1394, 0.0
        %v1457 = vsel %vm360, %v1395, 0.0
        %v1458 = vsel %vm359, %v1396, 0.0
        %v1459 = vsel %vm360, %v1397, 0.0
        %v1460 = vsel %vm359, %v1398, 0.0
        %v1461 = vsel %vm360, %v1399, 0.0
        %v1462 = vsel %vm359, %v1400, 0.0
        %v1463 = vsel %vm360, %v1401, 0.0
        %v1464 = vsel %vm359, %v1402, 0.0
        %v1465 = vsel %vm360, %v1403, 0.0
        %v1466 = vsel %vm359, %v1404, 0.0
        %v1467 = vsel %vm360, %v1405, 0.0
        %v1468 = vsel %vm359, %v1406, 0.0
        %v1469 = vsel %vm360, %v1407, 0.0
        %v1470 = vsel %vm359, %v1377, 0.0
        %v1471 = vsel %vm360, %v1379, 0.0
        %v1472 = vsel %vm359, %v1408, 0.0
        %v1473 = vsel %vm360, %v1409, 0.0
        %v1474 = vsel %vm359, %v1410, 0.0
        %v1475 = vsel %vm360, %v1411, 0.0
        %v1508 = vrot.slane %v1444, 5
        %v1509 = vrot.slane %v1446, 4
        %v1510 = vsel %vm490, %v1509, %v1508
        %v1511 = vrot.slane %v1448, 3
        %v1512 = vsel %vm493, %v1511, %v1510
        %v1513 = vrot.slane %v1450, 2
        %v1514 = vsel %vm496, %v1513, %v1512
        %v1515 = vrot.slane %v1452, 1
        %v1516 = vsel %vm499, %v1515, %v1514
        %v1517 = vsel %vm502, %v1454, %v1516
        %v1518 = vrot.slane %v1456, 7
        %v1519 = vsel %vm505, %v1518, %v1517
        %v1520 = vrot.slane %v1458, 6
        %v1521 = vsel %vm508, %v1520, %v1519
        %v1522 = vrot.slane %v1445, 5
        %v1523 = vrot.slane %v1447, 4
        %v1524 = vsel %vm490, %v1523, %v1522
        %v1525 = vrot.slane %v1449, 3
        %v1526 = vsel %vm493, %v1525, %v1524
        %v1527 = vrot.slane %v1451, 2
        %v1528 = vsel %vm496, %v1527, %v1526
        %v1529 = vrot.slane %v1453, 1
        %v1530 = vsel %vm499, %v1529, %v1528
        %v1531 = vsel %vm502, %v1455, %v1530
        %v1532 = vrot.slane %v1457, 7
        %v1533 = vsel %vm505, %v1532, %v1531
        %v1534 = vrot.slane %v1459, 6
        %v1535 = vsel %vm508, %v1534, %v1533
        %v1536 = vrot.slane %v1460, 5
        %v1537 = vrot.slane %v1462, 4
        %v1538 = vsel %vm490, %v1537, %v1536
        %v1539 = vrot.slane %v1464, 3
        %v1540 = vsel %vm493, %v1539, %v1538
        %v1541 = vrot.slane %v1466, 2
        %v1542 = vsel %vm496, %v1541, %v1540
        %v1543 = vrot.slane %v1468, 1
        %v1544 = vsel %vm499, %v1543, %v1542
        %v1545 = vsel %vm502, %v1470, %v1544
        %v1546 = vrot.slane %v1472, 7
        %v1547 = vsel %vm505, %v1546, %v1545
        %v1548 = vrot.slane %v1474, 6
        %v1549 = vsel %vm508, %v1548, %v1547
        %v1550 = vrot.slane %v1461, 5
        %v1551 = vrot.slane %v1463, 4
        %v1552 = vsel %vm490, %v1551, %v1550
        %v1553 = vrot.slane %v1465, 3
        %v1554 = vsel %vm493, %v1553, %v1552
        %v1555 = vrot.slane %v1467, 2
        %v1556 = vsel %vm496, %v1555, %v1554
        %v1557 = vrot.slane %v1469, 1
        %v1558 = vsel %vm499, %v1557, %v1556
        %v1559 = vsel %vm502, %v1471, %v1558
        %v1560 = vrot.slane %v1473, 7
        %v1561 = vsel %vm505, %v1560, %v1559
        %v1562 = vrot.slane %v1475, 6
        %v1563 = vsel %vm508, %v1562, %v1561
        %1568 = vst [vmem:[#allocation2 + $0xa0] sm:$0xff] %v1521
        %1569 = vst [vmem:[#allocation2 + $0xa8] sm:$0xff] %v1535
        %1570 = vst [vmem:[#allocation2 + $0xb0] sm:$0xff] %v1549
        %1571 = vst [vmem:[#allocation2 + $0xb8] sm:$0xff] %v1563
        %1572 = vrot.lane.b32.xlu0 %v338, 113
        %v1573 = vpop.permute.xlu0 %1572
        %1574 = vrot.lane.b32.xlu0 %v340, 113
        %v1575 = vpop.permute.xlu0 %1574
        %1576 = vrot.lane.b32.xlu0 %v339, 113
        %v1577 = vpop.permute.xlu0 %1576
        %1578 = vrot.lane.b32.xlu0 %v341, 113
        %v1579 = vpop.permute.xlu0 %1578
        %vm1580 = vcmp.lt.s32.totalorder %v351, 113
        %v1581 = vsel %vm1580, %v1573, %v1577
        %v1582 = vsel %vm1580, %v1575, %v1579
        %v1583 = vsel %vm1580, %v1577, %v1573
        %v1584 = vsel %vm1580, %v1579, %v1575
        %v1589 = vrot.slane %v1581, 2
        %v1590 = vrot.slane %v1583, 2
        %v1591 = vrot.slane %v1581, 3
        %v1592 = vrot.slane %v1583, 3
        %v1593 = vrot.slane %v1581, 4
        %v1594 = vrot.slane %v1583, 4
        %v1595 = vrot.slane %v1581, 5
        %v1596 = vrot.slane %v1583, 5
        %v1597 = vrot.slane %v1581, 6
        %v1598 = vrot.slane %v1583, 6
        %v1599 = vrot.slane %v1581, 7
        %v1600 = vrot.slane %v1583, 7
        %v1601 = vrot.slane %v1581, 1
        %v1602 = vrot.slane %v1583, 1
        %v1603 = vrot.slane %v1582, 2
        %v1604 = vrot.slane %v1584, 2
        %v1605 = vrot.slane %v1582, 3
        %v1606 = vrot.slane %v1584, 3
        %v1607 = vrot.slane %v1582, 4
        %v1608 = vrot.slane %v1584, 4
        %v1609 = vrot.slane %v1582, 5
        %v1610 = vrot.slane %v1584, 5
        %v1611 = vrot.slane %v1582, 6
        %v1612 = vrot.slane %v1584, 6
        %v1613 = vrot.slane %v1582, 7
        %v1614 = vrot.slane %v1584, 7
        %v1615 = vrot.slane %v1582, 1
        %v1616 = vrot.slane %v1584, 1
        %v1649 = vsel %vm359, %v1589, 0.0
        %v1650 = vsel %vm360, %v1590, 0.0
        %v1651 = vsel %vm359, %v1591, 0.0
        %v1652 = vsel %vm360, %v1592, 0.0
        %v1653 = vsel %vm359, %v1593, 0.0
        %v1654 = vsel %vm360, %v1594, 0.0
        %v1655 = vsel %vm359, %v1595, 0.0
        %v1656 = vsel %vm360, %v1596, 0.0
        %v1657 = vsel %vm359, %v1597, 0.0
        %v1658 = vsel %vm360, %v1598, 0.0
        %v1659 = vsel %vm359, %v1599, 0.0
        %v1660 = vsel %vm360, %v1600, 0.0
        %v1661 = vsel %vm359, %v1581, 0.0
        %v1662 = vsel %vm360, %v1583, 0.0
        %v1663 = vsel %vm359, %v1601, 0.0
        %v1664 = vsel %vm360, %v1602, 0.0
        %v1665 = vsel %vm359, %v1603, 0.0
        %v1666 = vsel %vm360, %v1604, 0.0
        %v1667 = vsel %vm359, %v1605, 0.0
        %v1668 = vsel %vm360, %v1606, 0.0
        %v1669 = vsel %vm359, %v1607, 0.0
        %v1670 = vsel %vm360, %v1608, 0.0
        %v1671 = vsel %vm359, %v1609, 0.0
        %v1672 = vsel %vm360, %v1610, 0.0
        %v1673 = vsel %vm359, %v1611, 0.0
        %v1674 = vsel %vm360, %v1612, 0.0
        %v1675 = vsel %vm359, %v1613, 0.0
        %v1676 = vsel %vm360, %v1614, 0.0
        %v1677 = vsel %vm359, %v1582, 0.0
        %v1678 = vsel %vm360, %v1584, 0.0
        %v1679 = vsel %vm359, %v1615, 0.0
        %v1680 = vsel %vm360, %v1616, 0.0
        %v1713 = vrot.slane %v1649, 6
        %v1714 = vrot.slane %v1651, 5
        %v1715 = vsel %vm490, %v1714, %v1713
        %v1716 = vrot.slane %v1653, 4
        %v1717 = vsel %vm493, %v1716, %v1715
        %v1718 = vrot.slane %v1655, 3
        %v1719 = vsel %vm496, %v1718, %v1717
        %v1720 = vrot.slane %v1657, 2
        %v1721 = vsel %vm499, %v1720, %v1719
        %v1722 = vrot.slane %v1659, 1
        %v1723 = vsel %vm502, %v1722, %v1721
        %v1724 = vsel %vm505, %v1661, %v1723
        %v1725 = vrot.slane %v1663, 7
        %v1726 = vsel %vm508, %v1725, %v1724
        %v1727 = vrot.slane %v1650, 6
        %v1728 = vrot.slane %v1652, 5
        %v1729 = vsel %vm490, %v1728, %v1727
        %v1730 = vrot.slane %v1654, 4
        %v1731 = vsel %vm493, %v1730, %v1729
        %v1732 = vrot.slane %v1656, 3
        %v1733 = vsel %vm496, %v1732, %v1731
        %v1734 = vrot.slane %v1658, 2
        %v1735 = vsel %vm499, %v1734, %v1733
        %v1736 = vrot.slane %v1660, 1
        %v1737 = vsel %vm502, %v1736, %v1735
        %v1738 = vsel %vm505, %v1662, %v1737
        %v1739 = vrot.slane %v1664, 7
        %v1740 = vsel %vm508, %v1739, %v1738
        %v1741 = vrot.slane %v1665, 6
        %v1742 = vrot.slane %v1667, 5
        %v1743 = vsel %vm490, %v1742, %v1741
        %v1744 = vrot.slane %v1669, 4
        %v1745 = vsel %vm493, %v1744, %v1743
        %v1746 = vrot.slane %v1671, 3
        %v1747 = vsel %vm496, %v1746, %v1745
        %v1748 = vrot.slane %v1673, 2
        %v1749 = vsel %vm499, %v1748, %v1747
        %v1750 = vrot.slane %v1675, 1
        %v1751 = vsel %vm502, %v1750, %v1749
        %v1752 = vsel %vm505, %v1677, %v1751
        %v1753 = vrot.slane %v1679, 7
        %v1754 = vsel %vm508, %v1753, %v1752
        %v1755 = vrot.slane %v1666, 6
        %v1756 = vrot.slane %v1668, 5
        %v1757 = vsel %vm490, %v1756, %v1755
        %v1758 = vrot.slane %v1670, 4
        %v1759 = vsel %vm493, %v1758, %v1757
        %v1760 = vrot.slane %v1672, 3
        %v1761 = vsel %vm496, %v1760, %v1759
        %v1762 = vrot.slane %v1674, 2
        %v1763 = vsel %vm499, %v1762, %v1761
        %v1764 = vrot.slane %v1676, 1
        %v1765 = vsel %vm502, %v1764, %v1763
        %v1766 = vsel %vm505, %v1678, %v1765
        %v1767 = vrot.slane %v1680, 7
        %v1768 = vsel %vm508, %v1767, %v1766
        %1773 = vst [vmem:[#allocation2 + $0xc0] sm:$0xff] %v1726
        %1774 = vst [vmem:[#allocation2 + $0xc8] sm:$0xff] %v1740
        %1775 = vst [vmem:[#allocation2 + $0xd0] sm:$0xff] %v1754
        %1776 = vst [vmem:[#allocation2 + $0xd8] sm:$0xff] %v1768
        %1777 = vrot.lane.b32.xlu0 %v338, 112
        %v1778 = vpop.permute.xlu0 %1777
        %1779 = vrot.lane.b32.xlu0 %v340, 112
        %v1780 = vpop.permute.xlu0 %1779
        %1781 = vrot.lane.b32.xlu0 %v339, 112
        %v1782 = vpop.permute.xlu0 %1781
        %1783 = vrot.lane.b32.xlu0 %v341, 112
        %v1784 = vpop.permute.xlu0 %1783
        %vm1785 = vcmp.lt.s32.totalorder %v351, 112
        %v1786 = vsel %vm1785, %v1778, %v1782
        %v1787 = vsel %vm1785, %v1780, %v1784
        %v1788 = vsel %vm1785, %v1782, %v1778
        %v1789 = vsel %vm1785, %v1784, %v1780
        %v1794 = vrot.slane %v1786, 1
        %v1795 = vrot.slane %v1788, 1
        %v1796 = vrot.slane %v1786, 2
        %v1797 = vrot.slane %v1788, 2
        %v1798 = vrot.slane %v1786, 3
        %v1799 = vrot.slane %v1788, 3
        %v1800 = vrot.slane %v1786, 4
        %v1801 = vrot.slane %v1788, 4
        %v1802 = vrot.slane %v1786, 5
        %v1803 = vrot.slane %v1788, 5
        %v1804 = vrot.slane %v1786, 6
        %v1805 = vrot.slane %v1788, 6
        %v1806 = vrot.slane %v1786, 7
        %v1807 = vrot.slane %v1788, 7
        %v1808 = vrot.slane %v1787, 1
        %v1809 = vrot.slane %v1789, 1
        %v1810 = vrot.slane %v1787, 2
        %v1811 = vrot.slane %v1789, 2
        %v1812 = vrot.slane %v1787, 3
        %v1813 = vrot.slane %v1789, 3
        %v1814 = vrot.slane %v1787, 4
        %v1815 = vrot.slane %v1789, 4
        %v1816 = vrot.slane %v1787, 5
        %v1817 = vrot.slane %v1789, 5
        %v1818 = vrot.slane %v1787, 6
        %v1819 = vrot.slane %v1789, 6
        %v1820 = vrot.slane %v1787, 7
        %v1821 = vrot.slane %v1789, 7
        %v1854 = vsel %vm359, %v1794, 0.0
        %v1855 = vsel %vm360, %v1795, 0.0
        %v1856 = vsel %vm359, %v1796, 0.0
        %v1857 = vsel %vm360, %v1797, 0.0
        %v1858 = vsel %vm359, %v1798, 0.0
        %v1859 = vsel %vm360, %v1799, 0.0
        %v1860 = vsel %vm359, %v1800, 0.0
        %v1861 = vsel %vm360, %v1801, 0.0
        %v1862 = vsel %vm359, %v1802, 0.0
        %v1863 = vsel %vm360, %v1803, 0.0
        %v1864 = vsel %vm359, %v1804, 0.0
        %v1865 = vsel %vm360, %v1805, 0.0
        %v1866 = vsel %vm359, %v1806, 0.0
        %v1867 = vsel %vm360, %v1807, 0.0
        %v1868 = vsel %vm359, %v1786, 0.0
        %v1869 = vsel %vm360, %v1788, 0.0
        %v1870 = vsel %vm359, %v1808, 0.0
        %v1871 = vsel %vm360, %v1809, 0.0
        %v1872 = vsel %vm359, %v1810, 0.0
        %v1873 = vsel %vm360, %v1811, 0.0
        %v1874 = vsel %vm359, %v1812, 0.0
        %v1875 = vsel %vm360, %v1813, 0.0
        %v1876 = vsel %vm359, %v1814, 0.0
        %v1877 = vsel %vm360, %v1815, 0.0
        %v1878 = vsel %vm359, %v1816, 0.0
        %v1879 = vsel %vm360, %v1817, 0.0
        %v1880 = vsel %vm359, %v1818, 0.0
        %v1881 = vsel %vm360, %v1819, 0.0
        %v1882 = vsel %vm359, %v1820, 0.0
        %v1883 = vsel %vm360, %v1821, 0.0
        %v1884 = vsel %vm359, %v1787, 0.0
        %v1885 = vsel %vm360, %v1789, 0.0
        %v1918 = vrot.slane %v1854, 7
        %v1919 = vrot.slane %v1856, 6
        %v1920 = vsel %vm490, %v1919, %v1918
        %v1921 = vrot.slane %v1858, 5
        %v1922 = vsel %vm493, %v1921, %v1920
        %v1923 = vrot.slane %v1860, 4
        %v1924 = vsel %vm496, %v1923, %v1922
        %v1925 = vrot.slane %v1862, 3
        %v1926 = vsel %vm499, %v1925, %v1924
        %v1927 = vrot.slane %v1864, 2
        %v1928 = vsel %vm502, %v1927, %v1926
        %v1929 = vrot.slane %v1866, 1
        %v1930 = vsel %vm505, %v1929, %v1928
        %v1931 = vsel %vm508, %v1868, %v1930
        %v1932 = vrot.slane %v1855, 7
        %v1933 = vrot.slane %v1857, 6
        %v1934 = vsel %vm490, %v1933, %v1932
        %v1935 = vrot.slane %v1859, 5
        %v1936 = vsel %vm493, %v1935, %v1934
        %v1937 = vrot.slane %v1861, 4
        %v1938 = vsel %vm496, %v1937, %v1936
        %v1939 = vrot.slane %v1863, 3
        %v1940 = vsel %vm499, %v1939, %v1938
        %v1941 = vrot.slane %v1865, 2
        %v1942 = vsel %vm502, %v1941, %v1940
        %v1943 = vrot.slane %v1867, 1
        %v1944 = vsel %vm505, %v1943, %v1942
        %v1945 = vsel %vm508, %v1869, %v1944
        %v1946 = vrot.slane %v1870, 7
        %v1947 = vrot.slane %v1872, 6
        %v1948 = vsel %vm490, %v1947, %v1946
        %v1949 = vrot.slane %v1874, 5
        %v1950 = vsel %vm493, %v1949, %v1948
        %v1951 = vrot.slane %v1876, 4
        %v1952 = vsel %vm496, %v1951, %v1950
        %v1953 = vrot.slane %v1878, 3
        %v1954 = vsel %vm499, %v1953, %v1952
        %v1955 = vrot.slane %v1880, 2
        %v1956 = vsel %vm502, %v1955, %v1954
        %v1957 = vrot.slane %v1882, 1
        %v1958 = vsel %vm505, %v1957, %v1956
        %v1959 = vsel %vm508, %v1884, %v1958
        %v1960 = vrot.slane %v1871, 7
        %v1961 = vrot.slane %v1873, 6
        %v1962 = vsel %vm490, %v1961, %v1960
        %v1963 = vrot.slane %v1875, 5
        %v1964 = vsel %vm493, %v1963, %v1962
        %v1965 = vrot.slane %v1877, 4
        %v1966 = vsel %vm496, %v1965, %v1964
        %v1967 = vrot.slane %v1879, 3
        %v1968 = vsel %vm499, %v1967, %v1966
        %v1969 = vrot.slane %v1881, 2
        %v1970 = vsel %vm502, %v1969, %v1968
        %v1971 = vrot.slane %v1883, 1
        %v1972 = vsel %vm505, %v1971, %v1970
        %v1973 = vsel %vm508, %v1885, %v1972
        %1978 = vst [vmem:[#allocation2 + $0xe0] sm:$0xff] %v1931
        %1979 = vst [vmem:[#allocation2 + $0xe8] sm:$0xff] %v1945
        %1980 = vst [vmem:[#allocation2 + $0xf0] sm:$0xff] %v1959
        %1981 = vst [vmem:[#allocation2 + $0xf8] sm:$0xff] %v1973
        %1982 = vrot.lane.b32.xlu0 %v338, 111
        %v1983 = vpop.permute.xlu0 %1982
        %1984 = vrot.lane.b32.xlu0 %v340, 111
        %v1985 = vpop.permute.xlu0 %1984
        %1986 = vrot.lane.b32.xlu0 %v339, 111
        %v1987 = vpop.permute.xlu0 %1986
        %1988 = vrot.lane.b32.xlu0 %v341, 111
        %v1989 = vpop.permute.xlu0 %1988
        %vm1990 = vcmp.lt.s32.totalorder %v351, 111
        %v1991 = vsel %vm1990, %v1983, %v1987
        %v1992 = vsel %vm1990, %v1985, %v1989
        %v1993 = vsel %vm1990, %v1987, %v1983
        %v1994 = vsel %vm1990, %v1989, %v1985
        %v1995 = vsel %vm323, 1, 0
        %v1996 = vsel %vm324, 1, 0
        %vm1997 = vcmp.eq.s32.totalorder %v1995, 1
        %vm1998 = vcmp.eq.s32.totalorder %v1996, 1
        %v2003 = vrot.slane %v1991, 1
        %v2004 = vrot.slane %v1993, 1
        %v2005 = vrot.slane %v1991, 2
        %v2006 = vrot.slane %v1993, 2
        %v2007 = vrot.slane %v1991, 3
        %v2008 = vrot.slane %v1993, 3
        %v2009 = vrot.slane %v1991, 4
        %v2010 = vrot.slane %v1993, 4
        %v2011 = vrot.slane %v1991, 5
        %v2012 = vrot.slane %v1993, 5
        %v2013 = vrot.slane %v1991, 6
        %v2014 = vrot.slane %v1993, 6
        %v2015 = vrot.slane %v1991, 7
        %v2016 = vrot.slane %v1993, 7
        %v2017 = vrot.slane %v1992, 1
        %v2018 = vrot.slane %v1994, 1
        %v2019 = vrot.slane %v1992, 2
        %v2020 = vrot.slane %v1994, 2
        %v2021 = vrot.slane %v1992, 3
        %v2022 = vrot.slane %v1994, 3
        %v2023 = vrot.slane %v1992, 4
        %v2024 = vrot.slane %v1994, 4
        %v2025 = vrot.slane %v1992, 5
        %v2026 = vrot.slane %v1994, 5
        %v2027 = vrot.slane %v1992, 6
        %v2028 = vrot.slane %v1994, 6
        %v2029 = vrot.slane %v1992, 7
        %v2030 = vrot.slane %v1994, 7
        %v2063 = vsel %vm1997, %v1991, 0.0
        %v2064 = vsel %vm1998, %v1993, 0.0
        %v2065 = vsel %vm1997, %v2003, 0.0
        %v2066 = vsel %vm1998, %v2004, 0.0
        %v2067 = vsel %vm1997, %v2005, 0.0
        %v2068 = vsel %vm1998, %v2006, 0.0
        %v2069 = vsel %vm1997, %v2007, 0.0
        %v2070 = vsel %vm1998, %v2008, 0.0
        %v2071 = vsel %vm1997, %v2009, 0.0
        %v2072 = vsel %vm1998, %v2010, 0.0
        %v2073 = vsel %vm1997, %v2011, 0.0
        %v2074 = vsel %vm1998, %v2012, 0.0
        %v2075 = vsel %vm1997, %v2013, 0.0
        %v2076 = vsel %vm1998, %v2014, 0.0
        %v2077 = vsel %vm1997, %v2015, 0.0
        %v2078 = vsel %vm1998, %v2016, 0.0
        %v2079 = vsel %vm1997, %v1992, 0.0
        %v2080 = vsel %vm1998, %v1994, 0.0
        %v2081 = vsel %vm1997, %v2017, 0.0
        %v2082 = vsel %vm1998, %v2018, 0.0
        %v2083 = vsel %vm1997, %v2019, 0.0
        %v2084 = vsel %vm1998, %v2020, 0.0
        %v2085 = vsel %vm1997, %v2021, 0.0
        %v2086 = vsel %vm1998, %v2022, 0.0
        %v2087 = vsel %vm1997, %v2023, 0.0
        %v2088 = vsel %vm1998, %v2024, 0.0
        %v2089 = vsel %vm1997, %v2025, 0.0
        %v2090 = vsel %vm1998, %v2026, 0.0
        %v2091 = vsel %vm1997, %v2027, 0.0
        %v2092 = vsel %vm1998, %v2028, 0.0
        %v2093 = vsel %vm1997, %v2029, 0.0
        %v2094 = vsel %vm1998, %v2030, 0.0
        %v2127 = vrot.slane %v2065, 7
        %v2128 = vsel %vm490, %v2127, %v2063
        %v2129 = vrot.slane %v2067, 6
        %v2130 = vsel %vm493, %v2129, %v2128
        %v2131 = vrot.slane %v2069, 5
        %v2132 = vsel %vm496, %v2131, %v2130
        %v2133 = vrot.slane %v2071, 4
        %v2134 = vsel %vm499, %v2133, %v2132
        %v2135 = vrot.slane %v2073, 3
        %v2136 = vsel %vm502, %v2135, %v2134
        %v2137 = vrot.slane %v2075, 2
        %v2138 = vsel %vm505, %v2137, %v2136
        %v2139 = vrot.slane %v2077, 1
        %v2140 = vsel %vm508, %v2139, %v2138
        %v2141 = vrot.slane %v2066, 7
        %v2142 = vsel %vm490, %v2141, %v2064
        %v2143 = vrot.slane %v2068, 6
        %v2144 = vsel %vm493, %v2143, %v2142
        %v2145 = vrot.slane %v2070, 5
        %v2146 = vsel %vm496, %v2145, %v2144
        %v2147 = vrot.slane %v2072, 4
        %v2148 = vsel %vm499, %v2147, %v2146
        %v2149 = vrot.slane %v2074, 3
        %v2150 = vsel %vm502, %v2149, %v2148
        %v2151 = vrot.slane %v2076, 2
        %v2152 = vsel %vm505, %v2151, %v2150
        %v2153 = vrot.slane %v2078, 1
        %v2154 = vsel %vm508, %v2153, %v2152
        %v2155 = vrot.slane %v2081, 7
        %v2156 = vsel %vm490, %v2155, %v2079
        %v2157 = vrot.slane %v2083, 6
        %v2158 = vsel %vm493, %v2157, %v2156
        %v2159 = vrot.slane %v2085, 5
        %v2160 = vsel %vm496, %v2159, %v2158
        %v2161 = vrot.slane %v2087, 4
        %v2162 = vsel %vm499, %v2161, %v2160
        %v2163 = vrot.slane %v2089, 3
        %v2164 = vsel %vm502, %v2163, %v2162
        %v2165 = vrot.slane %v2091, 2
        %v2166 = vsel %vm505, %v2165, %v2164
        %v2167 = vrot.slane %v2093, 1
        %v2168 = vsel %vm508, %v2167, %v2166
        %v2169 = vrot.slane %v2082, 7
        %v2170 = vsel %vm490, %v2169, %v2080
        %v2171 = vrot.slane %v2084, 6
        %v2172 = vsel %vm493, %v2171, %v2170
        %v2173 = vrot.slane %v2086, 5
        %v2174 = vsel %vm496, %v2173, %v2172
        %v2175 = vrot.slane %v2088, 4
        %v2176 = vsel %vm499, %v2175, %v2174
        %v2177 = vrot.slane %v2090, 3
        %v2178 = vsel %vm502, %v2177, %v2176
        %v2179 = vrot.slane %v2092, 2
        %v2180 = vsel %vm505, %v2179, %v2178
        %v2181 = vrot.slane %v2094, 1
        %v2182 = vsel %vm508, %v2181, %v2180
        %2187 = vst [vmem:[#allocation2 + $0x100] sm:$0xff] %v2140
        %2188 = vst [vmem:[#allocation2 + $0x108] sm:$0xff] %v2154
        %2189 = vst [vmem:[#allocation2 + $0x110] sm:$0xff] %v2168
        %2190 = vst [vmem:[#allocation2 + $0x118] sm:$0xff] %v2182
        %v2191 = vld [vmem:[#allocation9] sm:$0xff]
        %v2192 = vld [vmem:[#allocation9 + $0x8] sm:$0xff]
        %v2193 = vld [vmem:[#allocation9 + $0x10] sm:$0xff]
        %v2194 = vld [vmem:[#allocation9 + $0x18] sm:$0xff]
        %v2195 = vld [vmem:[#allocation9 + $0x20] sm:$0xff]
        %v2196 = vld [vmem:[#allocation9 + $0x28] sm:$0xff]
        %v2197 = vld [vmem:[#allocation2] sm:$0xff]
        %v2198 = vld [vmem:[#allocation2 + $0x8] sm:$0xff]
        %v2199 = vld [vmem:[#allocation2 + $0x10] sm:$0xff]
        %v2200 = vld [vmem:[#allocation2 + $0x18] sm:$0xff]
        %v2201 = vld [vmem:[#allocation2 + $0x20] sm:$0xff]
        %v2202 = vld [vmem:[#allocation2 + $0x28] sm:$0xff]
        %v2203 = vld [vmem:[#allocation2 + $0x30] sm:$0xff]
        %v2204 = vld [vmem:[#allocation2 + $0x38] sm:$0xff]
        %v2205 = vld [vmem:[#allocation2 + $0x40] sm:$0xff]
        %v2206 = vld [vmem:[#allocation2 + $0x48] sm:$0xff]
        %v2207 = vld [vmem:[#allocation2 + $0x50] sm:$0xff]
        %v2208 = vld [vmem:[#allocation2 + $0x58] sm:$0xff]
        %v2209 = vld [vmem:[#allocation2 + $0x60] sm:$0xff]
        %v2210 = vld [vmem:[#allocation2 + $0x68] sm:$0xff]
        %v2211 = vld [vmem:[#allocation2 + $0x70] sm:$0xff]
        %v2212 = vld [vmem:[#allocation2 + $0x78] sm:$0xff]
        %v2213 = vld [vmem:[#allocation2 + $0x80] sm:$0xff]
        %v2214 = vld [vmem:[#allocation2 + $0x88] sm:$0xff]
        %v2215 = vld [vmem:[#allocation2 + $0x90] sm:$0xff]
        %v2216 = vld [vmem:[#allocation2 + $0x98] sm:$0xff]
        %v2217 = vld [vmem:[#allocation2 + $0xa0] sm:$0xff]
        %v2218 = vld [vmem:[#allocation2 + $0xa8] sm:$0xff]
        %v2219 = vld [vmem:[#allocation2 + $0xb0] sm:$0xff]
        %v2220 = vld [vmem:[#allocation2 + $0xb8] sm:$0xff]
        %v2221 = vld [vmem:[#allocation2 + $0xc0] sm:$0xff]
        %v2222 = vld [vmem:[#allocation2 + $0xc8] sm:$0xff]
        %v2223 = vld [vmem:[#allocation2 + $0xd0] sm:$0xff]
        %v2224 = vld [vmem:[#allocation2 + $0xd8] sm:$0xff]
        %v2225 = vld [vmem:[#allocation2 + $0xe0] sm:$0xff]
        %v2226 = vld [vmem:[#allocation2 + $0xe8] sm:$0xff]
        %v2227 = vld [vmem:[#allocation2 + $0xf0] sm:$0xff]
        %v2228 = vld [vmem:[#allocation2 + $0xf8] sm:$0xff]
        %v2229 = vld [vmem:[#allocation2 + $0x100] sm:$0xff]
        %v2230 = vld [vmem:[#allocation2 + $0x108] sm:$0xff]
        %v2231 = vld [vmem:[#allocation2 + $0x110] sm:$0xff]
        %v2232 = vld [vmem:[#allocation2 + $0x118] sm:$0xff]
        %v2233 = vld [vmem:[%s4] sm:$0xff]
        %v2234 = vld [vmem:[%s4 + $0x8] sm:$0xff]
        %v2235 = vld [vmem:[%s4 + $0x10] sm:$0xff]
        %2237 = vset.pattern.permute.xlu0 0
        %2238 = vperm.xlu0 %2237, %v2233
        %v2239 = vpop.permute.xlu0 %2238
        %2242 = vset.pattern.permute.xlu0 0
        %2243 = vperm.xlu0 %2242, %v2234
        %v2244 = vpop.permute.xlu0 %2243
        %2247 = vset.pattern.permute.xlu0 0
        %2248 = vperm.xlu0 %2247, %v2235
        %v2249 = vpop.permute.xlu0 %2248
        %vm2251 = vcmask 130048
        %v2253 = vsel %vm2251, %v2192, 0
        %v2256 = vsel %vm2251, %v2194, 0
        %v2259 = vsel %vm2251, %v2196, 0
        %2261 = vmatprep.subr.mxu0 %v2228
        %2262 = vmatpush1.msra.mxu0 %v2227
        %2263 = vmatprep.subr.mxu0 %v2226
        %2264 = vmatpush1.msra.mxu0 %v2225
        %2265 = vmatprep.subr.mxu0 %v2224
        %2266 = vmatpush1.msra.mxu0 %v2223
        %2267 = vmatprep.subr.mxu0 %v2222
        %2268 = vmatpush1.msra.mxu0 %v2221
        %2269 = vmatprep.subr.mxu0 %v2220
        %2270 = vmatpush1.msra.mxu0 %v2219
        %2271 = vmatprep.subr.mxu0 %v2218
        %2272 = vmatpush1.msra.mxu0 %v2217
        %2273 = vmatprep.subr.mxu0 %v2216
        %2274 = vmatpush1.msra.mxu0 %v2215
        %2275 = vmatprep.subr.mxu0 %v2214
        %2276 = vmatpush1.msra.mxu0 %v2213
        %2277 = vmatprep.subr.mxu0 %v2212
        %2278 = vmatpush1.msra.mxu0 %v2211
        %2279 = vmatprep.subr.mxu0 %v2210
        %2280 = vmatpush1.msra.mxu0 %v2209
        %2281 = vmatprep.subr.mxu0 %v2208
        %2282 = vmatpush1.msra.mxu0 %v2207
        %2283 = vmatprep.subr.mxu0 %v2206
        %2284 = vmatpush1.msra.mxu0 %v2205
        %2285 = vmatprep.subr.mxu0 %v2204
        %2286 = vmatpush1.msra.mxu0 %v2203
        %2287 = vmatprep.subr.mxu0 %v2202
        %2288 = vmatpush1.msra.mxu0 %v2201
        %2289 = vmatprep.subr.mxu0 %v2200
        %2290 = vmatpush1.msra.mxu0 %v2199
        %2291 = vmatprep.subr.mxu0 %v2198
        %2292 = vmatpush1.msra.mxu0 %v2197
        %2293 = vmatprep.subr.mxu0 0.0
        %2294 = vmatpush2.msra.mxu0 0.0
        %2295 = vmatprep.subr.mxu0 0.0
        %2296 = vmatpush2.msra.mxu0 0.0
        %2297 = vmatprep.subr.mxu0 0.0
        %2298 = vmatpush2.msra.mxu0 0.0
        %2299 = vmatprep.subr.mxu0 0.0
        %2300 = vmatpush2.msra.mxu0 0.0
        %2301 = vmatprep.subr.mxu0 0.0
        %2302 = vmatpush2.msra.mxu0 0.0
        %2303 = vmatprep.subr.mxu0 0.0
        %2304 = vmatpush2.msra.mxu0 0.0
        %2305 = vmatprep.subr.mxu0 0.0
        %2306 = vmatpush2.msra.mxu0 0.0
        %2307 = vmatprep.subr.mxu0 0.0
        %2308 = vmatpush2.msra.mxu0 0.0
        %2309 = vmatprep.subr.mxu0 0.0
        %2310 = vmatpush2.msra.mxu0 0.0
        %2311 = vmatprep.subr.mxu0 0.0
        %2312 = vmatpush2.msra.mxu0 0.0
        %2313 = vmatprep.subr.mxu0 0.0
        %2314 = vmatpush2.msra.mxu0 0.0
        %2315 = vmatprep.subr.mxu0 0.0
        %2316 = vmatpush2.msra.mxu0 0.0
        %2317 = vmatprep.subr.mxu0 0.0
        %2318 = vmatpush2.msra.mxu0 0.0
        %2319 = vmatprep.subr.mxu0 0.0
        %2320 = vmatpush2.msra.mxu0 0.0
        %2321 = vmatprep.subr.mxu0 %v2232
        %2322 = vmatpush2.msra.mxu0 %v2231
        %2323 = vmatprep.subr.mxu0 %v2230
        %2324 = vmatpush2.msra.mxu0 %v2229
        %2325 = vmatprep.mubr.f32.mxu0 %v2253
        %2326 = vmatmul.mubr.f32.gmra.mxu0 %v2191
        %v2327 = vpop.f32.mrf.mxu0
        %v2328 = vadd.f32 %v2239, %v2327
        %v2329 = vpop.f32.mrf.mxu0
        %v2330 = vadd.f32 %v2239, %v2329
        %2331 = vmatprep.mubr.f32.mxu0 %v2256
        %2332 = vmatmul.mubr.f32.gmra.mxu0 %v2193
        %v2333 = vpop.f32.mrf.mxu0
        %v2334 = vadd.f32 %v2244, %v2333
        %v2335 = vpop.f32.mrf.mxu0
        %v2336 = vadd.f32 %v2244, %v2335
        %2337 = vmatprep.mubr.f32.mxu0 %v2259
        %2338 = vmatmul.mubr.f32.gmra.mxu0 %v2195
        %v2339 = vpop.f32.mrf.mxu0
        %v2340 = vadd.f32 %v2249, %v2339
        %v2341 = vpop.f32.mrf.mxu0
        %v2342 = vadd.f32 %v2249, %v2341
        %2343 = vdwg.mxu0
        %v2344 = vxor.u32 %v2328, 2147483648
        %v2345 = vxor.u32 %v2330, 2147483648
        %v2346 = vmul.f32 %v2344, 1.442695
        %v2347 = vpow.pop %v2346
        %v2348 = vmul.f32 %v2345, 1.442695
        %v2349 = vpow.pop %v2348
        %v2350 = vadd.f32 %v2347, 1.0
        %v2351 = vadd.f32 %v2349, 1.0
        %v2352 = vrcp.pop %v2350
        %v2353 = vmul.f32 1.0, %v2352
        %v2354 = vrcp.pop %v2351
        %v2355 = vmul.f32 1.0, %v2354
        %v2356 = vxor.u32 %v2334, 2147483648
        %v2357 = vxor.u32 %v2336, 2147483648
        %v2358 = vmul.f32 %v2356, 1.442695
        %v2359 = vpow.pop %v2358
        %v2360 = vmul.f32 %v2357, 1.442695
        %v2361 = vpow.pop %v2360
        %v2362 = vadd.f32 %v2359, 1.0
        %v2363 = vadd.f32 %v2361, 1.0
        %v2364 = vrcp.pop %v2362
        %v2365 = vmul.f32 1.0, %v2364
        %v2366 = vrcp.pop %v2363
        %v2367 = vmul.f32 1.0, %v2366
        %v2368 = vld [vmem:[%s274] sm:$0xff]
        %v2369 = vld [vmem:[%s274 + $0x8] sm:$0xff]
        %v2370 = vmul.f32 %v2353, %v2368
        %v2371 = vmul.f32 %v2355, %v2369
        %2372 = vrot.lane.b32.xlu0 %v2370, 17
        %v2373 = vpop.permute.xlu0 %2372
        %2374 = vrot.lane.b32.xlu0 %v2371, 17
        %v2375 = vpop.permute.xlu0 %2374
        %v2376 = vsel %vm352, %v2373, %v2375
        %v2377 = vsel %vm352, %v2375, %v2373
        %v2380 = vrot.slane %v2377, 1
        %v2381 = vrot.slane %v2376, 1
        %v2382 = vrot.slane %v2377, 2
        %v2383 = vrot.slane %v2376, 2
        %v2384 = vrot.slane %v2377, 3
        %v2385 = vrot.slane %v2376, 3
        %v2386 = vrot.slane %v2377, 4
        %v2387 = vrot.slane %v2376, 4
        %v2388 = vrot.slane %v2377, 5
        %v2389 = vrot.slane %v2376, 5
        %v2390 = vrot.slane %v2377, 6
        %v2391 = vrot.slane %v2376, 6
        %v2392 = vrot.slane %v2377, 7
        %v2393 = vrot.slane %v2376, 7
        %v2410 = vsel %vm359, %v2377, 0.0
        %v2411 = vsel %vm360, %v2376, 0.0
        %v2412 = vsel %vm359, %v2380, 0.0
        %v2413 = vsel %vm360, %v2381, 0.0
        %v2414 = vsel %vm359, %v2382, 0.0
        %v2415 = vsel %vm360, %v2383, 0.0
        %v2416 = vsel %vm359, %v2384, 0.0
        %v2417 = vsel %vm360, %v2385, 0.0
        %v2418 = vsel %vm359, %v2386, 0.0
        %v2419 = vsel %vm360, %v2387, 0.0
        %v2420 = vsel %vm359, %v2388, 0.0
        %v2421 = vsel %vm360, %v2389, 0.0
        %v2422 = vsel %vm359, %v2390, 0.0
        %v2423 = vsel %vm360, %v2391, 0.0
        %v2424 = vsel %vm359, %v2392, 0.0
        %v2425 = vsel %vm360, %v2393, 0.0
        %v2442 = vrot.slane %v2412, 7
        %v2443 = vsel %vm490, %v2442, %v2410
        %v2444 = vrot.slane %v2414, 6
        %v2445 = vsel %vm493, %v2444, %v2443
        %v2446 = vrot.slane %v2416, 5
        %v2447 = vsel %vm496, %v2446, %v2445
        %v2448 = vrot.slane %v2418, 4
        %v2449 = vsel %vm499, %v2448, %v2447
        %v2450 = vrot.slane %v2420, 3
        %v2451 = vsel %vm502, %v2450, %v2449
        %v2452 = vrot.slane %v2422, 2
        %v2453 = vsel %vm505, %v2452, %v2451
        %v2454 = vrot.slane %v2424, 1
        %v2455 = vsel %vm508, %v2454, %v2453
        %v2456 = vrot.slane %v2413, 7
        %v2457 = vsel %vm490, %v2456, %v2411
        %v2458 = vrot.slane %v2415, 6
        %v2459 = vsel %vm493, %v2458, %v2457
        %v2460 = vrot.slane %v2417, 5
        %v2461 = vsel %vm496, %v2460, %v2459
        %v2462 = vrot.slane %v2419, 4
        %v2463 = vsel %vm499, %v2462, %v2461
        %v2464 = vrot.slane %v2421, 3
        %v2465 = vsel %vm502, %v2464, %v2463
        %v2466 = vrot.slane %v2423, 2
        %v2467 = vsel %vm505, %v2466, %v2465
        %v2468 = vrot.slane %v2425, 1
        %v2469 = vsel %vm508, %v2468, %v2467
        %2472 = vst [vmem:[#allocation3] sm:$0xff] %v2455
        %2473 = vst [vmem:[#allocation3 + $0x8] sm:$0xff] %v2469
        %2474 = vrot.lane.b32.xlu0 %v2370, 16
        %v2475 = vpop.permute.xlu0 %2474
        %2476 = vrot.lane.b32.xlu0 %v2371, 16
        %v2477 = vpop.permute.xlu0 %2476
        %v2478 = vsel %vm568, %v2475, %v2477
        %v2479 = vsel %vm568, %v2477, %v2475
        %v2482 = vrot.slane %v2479, 7
        %v2483 = vrot.slane %v2478, 7
        %v2484 = vrot.slane %v2479, 1
        %v2485 = vrot.slane %v2478, 1
        %v2486 = vrot.slane %v2479, 2
        %v2487 = vrot.slane %v2478, 2
        %v2488 = vrot.slane %v2479, 3
        %v2489 = vrot.slane %v2478, 3
        %v2490 = vrot.slane %v2479, 4
        %v2491 = vrot.slane %v2478, 4
        %v2492 = vrot.slane %v2479, 5
        %v2493 = vrot.slane %v2478, 5
        %v2494 = vrot.slane %v2479, 6
        %v2495 = vrot.slane %v2478, 6
        %v2512 = vsel %vm359, %v2482, 0.0
        %v2513 = vsel %vm360, %v2483, 0.0
        %v2514 = vsel %vm359, %v2479, 0.0
        %v2515 = vsel %vm360, %v2478, 0.0
        %v2516 = vsel %vm359, %v2484, 0.0
        %v2517 = vsel %vm360, %v2485, 0.0
        %v2518 = vsel %vm359, %v2486, 0.0
        %v2519 = vsel %vm360, %v2487, 0.0
        %v2520 = vsel %vm359, %v2488, 0.0
        %v2521 = vsel %vm360, %v2489, 0.0
        %v2522 = vsel %vm359, %v2490, 0.0
        %v2523 = vsel %vm360, %v2491, 0.0
        %v2524 = vsel %vm359, %v2492, 0.0
        %v2525 = vsel %vm360, %v2493, 0.0
        %v2526 = vsel %vm359, %v2494, 0.0
        %v2527 = vsel %vm360, %v2495, 0.0
        %v2544 = vrot.slane %v2512, 1
        %v2545 = vsel %vm490, %v2514, %v2544
        %v2546 = vrot.slane %v2516, 7
        %v2547 = vsel %vm493, %v2546, %v2545
        %v2548 = vrot.slane %v2518, 6
        %v2549 = vsel %vm496, %v2548, %v2547
        %v2550 = vrot.slane %v2520, 5
        %v2551 = vsel %vm499, %v2550, %v2549
        %v2552 = vrot.slane %v2522, 4
        %v2553 = vsel %vm502, %v2552, %v2551
        %v2554 = vrot.slane %v2524, 3
        %v2555 = vsel %vm505, %v2554, %v2553
        %v2556 = vrot.slane %v2526, 2
        %v2557 = vsel %vm508, %v2556, %v2555
        %v2558 = vrot.slane %v2513, 1
        %v2559 = vsel %vm490, %v2515, %v2558
        %v2560 = vrot.slane %v2517, 7
        %v2561 = vsel %vm493, %v2560, %v2559
        %v2562 = vrot.slane %v2519, 6
        %v2563 = vsel %vm496, %v2562, %v2561
        %v2564 = vrot.slane %v2521, 5
        %v2565 = vsel %vm499, %v2564, %v2563
        %v2566 = vrot.slane %v2523, 4
        %v2567 = vsel %vm502, %v2566, %v2565
        %v2568 = vrot.slane %v2525, 3
        %v2569 = vsel %vm505, %v2568, %v2567
        %v2570 = vrot.slane %v2527, 2
        %v2571 = vsel %vm508, %v2570, %v2569
        %2574 = vst [vmem:[#allocation3 + $0x10] sm:$0xff] %v2557
        %2575 = vst [vmem:[#allocation3 + $0x18] sm:$0xff] %v2571
        %2576 = vrot.lane.b32.xlu0 %v2370, 15
        %v2577 = vpop.permute.xlu0 %2576
        %2578 = vrot.lane.b32.xlu0 %v2371, 15
        %v2579 = vpop.permute.xlu0 %2578
        %v2580 = vsel %vm773, %v2577, %v2579
        %v2581 = vsel %vm773, %v2579, %v2577
        %v2584 = vrot.slane %v2581, 6
        %v2585 = vrot.slane %v2580, 6
        %v2586 = vrot.slane %v2581, 7
        %v2587 = vrot.slane %v2580, 7
        %v2588 = vrot.slane %v2581, 1
        %v2589 = vrot.slane %v2580, 1
        %v2590 = vrot.slane %v2581, 2
        %v2591 = vrot.slane %v2580, 2
        %v2592 = vrot.slane %v2581, 3
        %v2593 = vrot.slane %v2580, 3
        %v2594 = vrot.slane %v2581, 4
        %v2595 = vrot.slane %v2580, 4
        %v2596 = vrot.slane %v2581, 5
        %v2597 = vrot.slane %v2580, 5
        %v2614 = vsel %vm359, %v2584, 0.0
        %v2615 = vsel %vm360, %v2585, 0.0
        %v2616 = vsel %vm359, %v2586, 0.0
        %v2617 = vsel %vm360, %v2587, 0.0
        %v2618 = vsel %vm359, %v2581, 0.0
        %v2619 = vsel %vm360, %v2580, 0.0
        %v2620 = vsel %vm359, %v2588, 0.0
        %v2621 = vsel %vm360, %v2589, 0.0
        %v2622 = vsel %vm359, %v2590, 0.0
        %v2623 = vsel %vm360, %v2591, 0.0
        %v2624 = vsel %vm359, %v2592, 0.0
        %v2625 = vsel %vm360, %v2593, 0.0
        %v2626 = vsel %vm359, %v2594, 0.0
        %v2627 = vsel %vm360, %v2595, 0.0
        %v2628 = vsel %vm359, %v2596, 0.0
        %v2629 = vsel %vm360, %v2597, 0.0
        %v2646 = vrot.slane %v2614, 2
        %v2647 = vrot.slane %v2616, 1
        %v2648 = vsel %vm490, %v2647, %v2646
        %v2649 = vsel %vm493, %v2618, %v2648
        %v2650 = vrot.slane %v2620, 7
        %v2651 = vsel %vm496, %v2650, %v2649
        %v2652 = vrot.slane %v2622, 6
        %v2653 = vsel %vm499, %v2652, %v2651
        %v2654 = vrot.slane %v2624, 5
        %v2655 = vsel %vm502, %v2654, %v2653
        %v2656 = vrot.slane %v2626, 4
        %v2657 = vsel %vm505, %v2656, %v2655
        %v2658 = vrot.slane %v2628, 3
        %v2659 = vsel %vm508, %v2658, %v2657
        %v2660 = vrot.slane %v2615, 2
        %v2661 = vrot.slane %v2617, 1
        %v2662 = vsel %vm490, %v2661, %v2660
        %v2663 = vsel %vm493, %v2619, %v2662
        %v2664 = vrot.slane %v2621, 7
        %v2665 = vsel %vm496, %v2664, %v2663
        %v2666 = vrot.slane %v2623, 6
        %v2667 = vsel %vm499, %v2666, %v2665
        %v2668 = vrot.slane %v2625, 5
        %v2669 = vsel %vm502, %v2668, %v2667
        %v2670 = vrot.slane %v2627, 4
        %v2671 = vsel %vm505, %v2670, %v2669
        %v2672 = vrot.slane %v2629, 3
        %v2673 = vsel %vm508, %v2672, %v2671
        %2676 = vst [vmem:[#allocation3 + $0x20] sm:$0xff] %v2659
        %2677 = vst [vmem:[#allocation3 + $0x28] sm:$0xff] %v2673
        %2678 = vrot.lane.b32.xlu0 %v2370, 1
        %v2679 = vpop.permute.xlu0 %2678
        %2680 = vrot.lane.b32.xlu0 %v2371, 1
        %v2681 = vpop.permute.xlu0 %2680
        %v2682 = vsel %vm978, %v2679, %v2681
        %v2683 = vsel %vm978, %v2681, %v2679
        %v2686 = vrot.slane %v2683, 5
        %v2687 = vrot.slane %v2682, 5
        %v2688 = vrot.slane %v2683, 6
        %v2689 = vrot.slane %v2682, 6
        %v2690 = vrot.slane %v2683, 7
        %v2691 = vrot.slane %v2682, 7
        %v2692 = vrot.slane %v2683, 1
        %v2693 = vrot.slane %v2682, 1
        %v2694 = vrot.slane %v2683, 2
        %v2695 = vrot.slane %v2682, 2
        %v2696 = vrot.slane %v2683, 3
        %v2697 = vrot.slane %v2682, 3
        %v2698 = vrot.slane %v2683, 4
        %v2699 = vrot.slane %v2682, 4
        %v2716 = vsel %vm359, %v2686, 0.0
        %v2717 = vsel %vm360, %v2687, 0.0
        %v2718 = vsel %vm359, %v2688, 0.0
        %v2719 = vsel %vm360, %v2689, 0.0
        %v2720 = vsel %vm359, %v2690, 0.0
        %v2721 = vsel %vm360, %v2691, 0.0
        %v2722 = vsel %vm359, %v2683, 0.0
        %v2723 = vsel %vm360, %v2682, 0.0
        %v2724 = vsel %vm359, %v2692, 0.0
        %v2725 = vsel %vm360, %v2693, 0.0
        %v2726 = vsel %vm359, %v2694, 0.0
        %v2727 = vsel %vm360, %v2695, 0.0
        %v2728 = vsel %vm359, %v2696, 0.0
        %v2729 = vsel %vm360, %v2697, 0.0
        %v2730 = vsel %vm359, %v2698, 0.0
        %v2731 = vsel %vm360, %v2699, 0.0
        %v2748 = vrot.slane %v2716, 3
        %v2749 = vrot.slane %v2718, 2
        %v2750 = vsel %vm490, %v2749, %v2748
        %v2751 = vrot.slane %v2720, 1
        %v2752 = vsel %vm493, %v2751, %v2750
        %v2753 = vsel %vm496, %v2722, %v2752
        %v2754 = vrot.slane %v2724, 7
        %v2755 = vsel %vm499, %v2754, %v2753
        %v2756 = vrot.slane %v2726, 6
        %v2757 = vsel %vm502, %v2756, %v2755
        %v2758 = vrot.slane %v2728, 5
        %v2759 = vsel %vm505, %v2758, %v2757
        %v2760 = vrot.slane %v2730, 4
        %v2761 = vsel %vm508, %v2760, %v2759
        %v2762 = vrot.slane %v2717, 3
        %v2763 = vrot.slane %v2719, 2
        %v2764 = vsel %vm490, %v2763, %v2762
        %v2765 = vrot.slane %v2721, 1
        %v2766 = vsel %vm493, %v2765, %v2764
        %v2767 = vsel %vm496, %v2723, %v2766
        %v2768 = vrot.slane %v2725, 7
        %v2769 = vsel %vm499, %v2768, %v2767
        %v2770 = vrot.slane %v2727, 6
        %v2771 = vsel %vm502, %v2770, %v2769
        %v2772 = vrot.slane %v2729, 5
        %v2773 = vsel %vm505, %v2772, %v2771
        %v2774 = vrot.slane %v2731, 4
        %v2775 = vsel %vm508, %v2774, %v2773
        %2778 = vst [vmem:[#allocation3 + $0x30] sm:$0xff] %v2761
        %2779 = vst [vmem:[#allocation3 + $0x38] sm:$0xff] %v2775
        %v2782 = vrot.slane %v2370, 4
        %v2783 = vrot.slane %v2371, 4
        %v2784 = vrot.slane %v2370, 5
        %v2785 = vrot.slane %v2371, 5
        %v2786 = vrot.slane %v2370, 6
        %v2787 = vrot.slane %v2371, 6
        %v2788 = vrot.slane %v2370, 7
        %v2789 = vrot.slane %v2371, 7
        %v2790 = vrot.slane %v2370, 1
        %v2791 = vrot.slane %v2371, 1
        %v2792 = vrot.slane %v2370, 2
        %v2793 = vrot.slane %v2371, 2
        %v2794 = vrot.slane %v2370, 3
        %v2795 = vrot.slane %v2371, 3
        %v2812 = vsel %vm359, %v2782, 0.0
        %v2813 = vsel %vm360, %v2783, 0.0
        %v2814 = vsel %vm359, %v2784, 0.0
        %v2815 = vsel %vm360, %v2785, 0.0
        %v2816 = vsel %vm359, %v2786, 0.0
        %v2817 = vsel %vm360, %v2787, 0.0
        %v2818 = vsel %vm359, %v2788, 0.0
        %v2819 = vsel %vm360, %v2789, 0.0
        %v2820 = vsel %vm359, %v2370, 0.0
        %v2821 = vsel %vm360, %v2371, 0.0
        %v2822 = vsel %vm359, %v2790, 0.0
        %v2823 = vsel %vm360, %v2791, 0.0
        %v2824 = vsel %vm359, %v2792, 0.0
        %v2825 = vsel %vm360, %v2793, 0.0
        %v2826 = vsel %vm359, %v2794, 0.0
        %v2827 = vsel %vm360, %v2795, 0.0
        %v2844 = vrot.slane %v2812, 4
        %v2845 = vrot.slane %v2814, 3
        %v2846 = vsel %vm490, %v2845, %v2844
        %v2847 = vrot.slane %v2816, 2
        %v2848 = vsel %vm493, %v2847, %v2846
        %v2849 = vrot.slane %v2818, 1
        %v2850 = vsel %vm496, %v2849, %v2848
        %v2851 = vsel %vm499, %v2820, %v2850
        %v2852 = vrot.slane %v2822, 7
        %v2853 = vsel %vm502, %v2852, %v2851
        %v2854 = vrot.slane %v2824, 6
        %v2855 = vsel %vm505, %v2854, %v2853
        %v2856 = vrot.slane %v2826, 5
        %v2857 = vsel %vm508, %v2856, %v2855
        %v2858 = vrot.slane %v2813, 4
        %v2859 = vrot.slane %v2815, 3
        %v2860 = vsel %vm490, %v2859, %v2858
        %v2861 = vrot.slane %v2817, 2
        %v2862 = vsel %vm493, %v2861, %v2860
        %v2863 = vrot.slane %v2819, 1
        %v2864 = vsel %vm496, %v2863, %v2862
        %v2865 = vsel %vm499, %v2821, %v2864
        %v2866 = vrot.slane %v2823, 7
        %v2867 = vsel %vm502, %v2866, %v2865
        %v2868 = vrot.slane %v2825, 6
        %v2869 = vsel %vm505, %v2868, %v2867
        %v2870 = vrot.slane %v2827, 5
        %v2871 = vsel %vm508, %v2870, %v2869
        %2874 = vst [vmem:[#allocation3 + $0x40] sm:$0xff] %v2857
        %2875 = vst [vmem:[#allocation3 + $0x48] sm:$0xff] %v2871
        %2876 = vrot.lane.b32.xlu0 %v2370, 127
        %v2877 = vpop.permute.xlu0 %2876
        %2878 = vrot.lane.b32.xlu0 %v2371, 127
        %v2879 = vpop.permute.xlu0 %2878
        %v2880 = vsel %vm1375, %v2877, %v2879
        %v2881 = vsel %vm1375, %v2879, %v2877
        %v2884 = vrot.slane %v2880, 3
        %v2885 = vrot.slane %v2881, 3
        %v2886 = vrot.slane %v2880, 4
        %v2887 = vrot.slane %v2881, 4
        %v2888 = vrot.slane %v2880, 5
        %v2889 = vrot.slane %v2881, 5
        %v2890 = vrot.slane %v2880, 6
        %v2891 = vrot.slane %v2881, 6
        %v2892 = vrot.slane %v2880, 7
        %v2893 = vrot.slane %v2881, 7
        %v2894 = vrot.slane %v2880, 1
        %v2895 = vrot.slane %v2881, 1
        %v2896 = vrot.slane %v2880, 2
        %v2897 = vrot.slane %v2881, 2
        %v2914 = vsel %vm359, %v2884, 0.0
        %v2915 = vsel %vm360, %v2885, 0.0
        %v2916 = vsel %vm359, %v2886, 0.0
        %v2917 = vsel %vm360, %v2887, 0.0
        %v2918 = vsel %vm359, %v2888, 0.0
        %v2919 = vsel %vm360, %v2889, 0.0
        %v2920 = vsel %vm359, %v2890, 0.0
        %v2921 = vsel %vm360, %v2891, 0.0
        %v2922 = vsel %vm359, %v2892, 0.0
        %v2923 = vsel %vm360, %v2893, 0.0
        %v2924 = vsel %vm359, %v2880, 0.0
        %v2925 = vsel %vm360, %v2881, 0.0
        %v2926 = vsel %vm359, %v2894, 0.0
        %v2927 = vsel %vm360, %v2895, 0.0
        %v2928 = vsel %vm359, %v2896, 0.0
        %v2929 = vsel %vm360, %v2897, 0.0
        %v2946 = vrot.slane %v2914, 5
        %v2947 = vrot.slane %v2916, 4
        %v2948 = vsel %vm490, %v2947, %v2946
        %v2949 = vrot.slane %v2918, 3
        %v2950 = vsel %vm493, %v2949, %v2948
        %v2951 = vrot.slane %v2920, 2
        %v2952 = vsel %vm496, %v2951, %v2950
        %v2953 = vrot.slane %v2922, 1
        %v2954 = vsel %vm499, %v2953, %v2952
        %v2955 = vsel %vm502, %v2924, %v2954
        %v2956 = vrot.slane %v2926, 7
        %v2957 = vsel %vm505, %v2956, %v2955
        %v2958 = vrot.slane %v2928, 6
        %v2959 = vsel %vm508, %v2958, %v2957
        %v2960 = vrot.slane %v2915, 5
        %v2961 = vrot.slane %v2917, 4
        %v2962 = vsel %vm490, %v2961, %v2960
        %v2963 = vrot.slane %v2919, 3
        %v2964 = vsel %vm493, %v2963, %v2962
        %v2965 = vrot.slane %v2921, 2
        %v2966 = vsel %vm496, %v2965, %v2964
        %v2967 = vrot.slane %v2923, 1
        %v2968 = vsel %vm499, %v2967, %v2966
        %v2969 = vsel %vm502, %v2925, %v2968
        %v2970 = vrot.slane %v2927, 7
        %v2971 = vsel %vm505, %v2970, %v2969
        %v2972 = vrot.slane %v2929, 6
        %v2973 = vsel %vm508, %v2972, %v2971
        %2976 = vst [vmem:[#allocation3 + $0x50] sm:$0xff] %v2959
        %2977 = vst [vmem:[#allocation3 + $0x58] sm:$0xff] %v2973
        %2978 = vrot.lane.b32.xlu0 %v2370, 113
        %v2979 = vpop.permute.xlu0 %2978
        %2980 = vrot.lane.b32.xlu0 %v2371, 113
        %v2981 = vpop.permute.xlu0 %2980
        %v2982 = vsel %vm1580, %v2979, %v2981
        %v2983 = vsel %vm1580, %v2981, %v2979
        %v2986 = vrot.slane %v2982, 2
        %v2987 = vrot.slane %v2983, 2
        %v2988 = vrot.slane %v2982, 3
        %v2989 = vrot.slane %v2983, 3
        %v2990 = vrot.slane %v2982, 4
        %v2991 = vrot.slane %v2983, 4
        %v2992 = vrot.slane %v2982, 5
        %v2993 = vrot.slane %v2983, 5
        %v2994 = vrot.slane %v2982, 6
        %v2995 = vrot.slane %v2983, 6
        %v2996 = vrot.slane %v2982, 7
        %v2997 = vrot.slane %v2983, 7
        %v2998 = vrot.slane %v2982, 1
        %v2999 = vrot.slane %v2983, 1
        %v3016 = vsel %vm359, %v2986, 0.0
        %v3017 = vsel %vm360, %v2987, 0.0
        %v3018 = vsel %vm359, %v2988, 0.0
        %v3019 = vsel %vm360, %v2989, 0.0
        %v3020 = vsel %vm359, %v2990, 0.0
        %v3021 = vsel %vm360, %v2991, 0.0
        %v3022 = vsel %vm359, %v2992, 0.0
        %v3023 = vsel %vm360, %v2993, 0.0
        %v3024 = vsel %vm359, %v2994, 0.0
        %v3025 = vsel %vm360, %v2995, 0.0
        %v3026 = vsel %vm359, %v2996, 0.0
        %v3027 = vsel %vm360, %v2997, 0.0
        %v3028 = vsel %vm359, %v2982, 0.0
        %v3029 = vsel %vm360, %v2983, 0.0
        %v3030 = vsel %vm359, %v2998, 0.0
        %v3031 = vsel %vm360, %v2999, 0.0
        %v3048 = vrot.slane %v3016, 6
        %v3049 = vrot.slane %v3018, 5
        %v3050 = vsel %vm490, %v3049, %v3048
        %v3051 = vrot.slane %v3020, 4
        %v3052 = vsel %vm493, %v3051, %v3050
        %v3053 = vrot.slane %v3022, 3
        %v3054 = vsel %vm496, %v3053, %v3052
        %v3055 = vrot.slane %v3024, 2
        %v3056 = vsel %vm499, %v3055, %v3054
        %v3057 = vrot.slane %v3026, 1
        %v3058 = vsel %vm502, %v3057, %v3056
        %v3059 = vsel %vm505, %v3028, %v3058
        %v3060 = vrot.slane %v3030, 7
        %v3061 = vsel %vm508, %v3060, %v3059
        %v3062 = vrot.slane %v3017, 6
        %v3063 = vrot.slane %v3019, 5
        %v3064 = vsel %vm490, %v3063, %v3062
        %v3065 = vrot.slane %v3021, 4
        %v3066 = vsel %vm493, %v3065, %v3064
        %v3067 = vrot.slane %v3023, 3
        %v3068 = vsel %vm496, %v3067, %v3066
        %v3069 = vrot.slane %v3025, 2
        %v3070 = vsel %vm499, %v3069, %v3068
        %v3071 = vrot.slane %v3027, 1
        %v3072 = vsel %vm502, %v3071, %v3070
        %v3073 = vsel %vm505, %v3029, %v3072
        %v3074 = vrot.slane %v3031, 7
        %v3075 = vsel %vm508, %v3074, %v3073
        %3078 = vst [vmem:[#allocation3 + $0x60] sm:$0xff] %v3061
        %3079 = vst [vmem:[#allocation3 + $0x68] sm:$0xff] %v3075
        %3080 = vrot.lane.b32.xlu0 %v2370, 112
        %v3081 = vpop.permute.xlu0 %3080
        %3082 = vrot.lane.b32.xlu0 %v2371, 112
        %v3083 = vpop.permute.xlu0 %3082
        %v3084 = vsel %vm1785, %v3081, %v3083
        %v3085 = vsel %vm1785, %v3083, %v3081
        %v3088 = vrot.slane %v3084, 1
        %v3089 = vrot.slane %v3085, 1
        %v3090 = vrot.slane %v3084, 2
        %v3091 = vrot.slane %v3085, 2
        %v3092 = vrot.slane %v3084, 3
        %v3093 = vrot.slane %v3085, 3
        %v3094 = vrot.slane %v3084, 4
        %v3095 = vrot.slane %v3085, 4
        %v3096 = vrot.slane %v3084, 5
        %v3097 = vrot.slane %v3085, 5
        %v3098 = vrot.slane %v3084, 6
        %v3099 = vrot.slane %v3085, 6
        %v3100 = vrot.slane %v3084, 7
        %v3101 = vrot.slane %v3085, 7
        %v3118 = vsel %vm359, %v3088, 0.0
        %v3119 = vsel %vm360, %v3089, 0.0
        %v3120 = vsel %vm359, %v3090, 0.0
        %v3121 = vsel %vm360, %v3091, 0.0
        %v3122 = vsel %vm359, %v3092, 0.0
        %v3123 = vsel %vm360, %v3093, 0.0
        %v3124 = vsel %vm359, %v3094, 0.0
        %v3125 = vsel %vm360, %v3095, 0.0
        %v3126 = vsel %vm359, %v3096, 0.0
        %v3127 = vsel %vm360, %v3097, 0.0
        %v3128 = vsel %vm359, %v3098, 0.0
        %v3129 = vsel %vm360, %v3099, 0.0
        %v3130 = vsel %vm359, %v3100, 0.0
        %v3131 = vsel %vm360, %v3101, 0.0
        %v3132 = vsel %vm359, %v3084, 0.0
        %v3133 = vsel %vm360, %v3085, 0.0
        %v3150 = vrot.slane %v3118, 7
        %v3151 = vrot.slane %v3120, 6
        %v3152 = vsel %vm490, %v3151, %v3150
        %v3153 = vrot.slane %v3122, 5
        %v3154 = vsel %vm493, %v3153, %v3152
        %v3155 = vrot.slane %v3124, 4
        %v3156 = vsel %vm496, %v3155, %v3154
        %v3157 = vrot.slane %v3126, 3
        %v3158 = vsel %vm499, %v3157, %v3156
        %v3159 = vrot.slane %v3128, 2
        %v3160 = vsel %vm502, %v3159, %v3158
        %v3161 = vrot.slane %v3130, 1
        %v3162 = vsel %vm505, %v3161, %v3160
        %v3163 = vsel %vm508, %v3132, %v3162
        %v3164 = vrot.slane %v3119, 7
        %v3165 = vrot.slane %v3121, 6
        %v3166 = vsel %vm490, %v3165, %v3164
        %v3167 = vrot.slane %v3123, 5
        %v3168 = vsel %vm493, %v3167, %v3166
        %v3169 = vrot.slane %v3125, 4
        %v3170 = vsel %vm496, %v3169, %v3168
        %v3171 = vrot.slane %v3127, 3
        %v3172 = vsel %vm499, %v3171, %v3170
        %v3173 = vrot.slane %v3129, 2
        %v3174 = vsel %vm502, %v3173, %v3172
        %v3175 = vrot.slane %v3131, 1
        %v3176 = vsel %vm505, %v3175, %v3174
        %v3177 = vsel %vm508, %v3133, %v3176
        %3180 = vst [vmem:[#allocation3 + $0x70] sm:$0xff] %v3163
        %3181 = vst [vmem:[#allocation3 + $0x78] sm:$0xff] %v3177
        %3182 = vrot.lane.b32.xlu0 %v2370, 111
        %v3183 = vpop.permute.xlu0 %3182
        %3184 = vrot.lane.b32.xlu0 %v2371, 111
        %v3185 = vpop.permute.xlu0 %3184
        %v3186 = vsel %vm1990, %v3183, %v3185
        %v3187 = vsel %vm1990, %v3185, %v3183
        %v3190 = vrot.slane %v3186, 1
        %v3191 = vrot.slane %v3187, 1
        %v3192 = vrot.slane %v3186, 2
        %v3193 = vrot.slane %v3187, 2
        %v3194 = vrot.slane %v3186, 3
        %v3195 = vrot.slane %v3187, 3
        %v3196 = vrot.slane %v3186, 4
        %v3197 = vrot.slane %v3187, 4
        %v3198 = vrot.slane %v3186, 5
        %v3199 = vrot.slane %v3187, 5
        %v3200 = vrot.slane %v3186, 6
        %v3201 = vrot.slane %v3187, 6
        %v3202 = vrot.slane %v3186, 7
        %v3203 = vrot.slane %v3187, 7
        %v3220 = vsel %vm1997, %v3186, 0.0
        %v3221 = vsel %vm1998, %v3187, 0.0
        %v3222 = vsel %vm1997, %v3190, 0.0
        %v3223 = vsel %vm1998, %v3191, 0.0
        %v3224 = vsel %vm1997, %v3192, 0.0
        %v3225 = vsel %vm1998, %v3193, 0.0
        %v3226 = vsel %vm1997, %v3194, 0.0
        %v3227 = vsel %vm1998, %v3195, 0.0
        %v3228 = vsel %vm1997, %v3196, 0.0
        %v3229 = vsel %vm1998, %v3197, 0.0
        %v3230 = vsel %vm1997, %v3198, 0.0
        %v3231 = vsel %vm1998, %v3199, 0.0
        %v3232 = vsel %vm1997, %v3200, 0.0
        %v3233 = vsel %vm1998, %v3201, 0.0
        %v3234 = vsel %vm1997, %v3202, 0.0
        %v3235 = vsel %vm1998, %v3203, 0.0
        %v3252 = vrot.slane %v3222, 7
        %v3253 = vsel %vm490, %v3252, %v3220
        %v3254 = vrot.slane %v3224, 6
        %v3255 = vsel %vm493, %v3254, %v3253
        %v3256 = vrot.slane %v3226, 5
        %v3257 = vsel %vm496, %v3256, %v3255
        %v3258 = vrot.slane %v3228, 4
        %v3259 = vsel %vm499, %v3258, %v3257
        %v3260 = vrot.slane %v3230, 3
        %v3261 = vsel %vm502, %v3260, %v3259
        %v3262 = vrot.slane %v3232, 2
        %v3263 = vsel %vm505, %v3262, %v3261
        %v3264 = vrot.slane %v3234, 1
        %v3265 = vsel %vm508, %v3264, %v3263
        %v3266 = vrot.slane %v3223, 7
        %v3267 = vsel %vm490, %v3266, %v3221
        %v3268 = vrot.slane %v3225, 6
        %v3269 = vsel %vm493, %v3268, %v3267
        %v3270 = vrot.slane %v3227, 5
        %v3271 = vsel %vm496, %v3270, %v3269
        %v3272 = vrot.slane %v3229, 4
        %v3273 = vsel %vm499, %v3272, %v3271
        %v3274 = vrot.slane %v3231, 3
        %v3275 = vsel %vm502, %v3274, %v3273
        %v3276 = vrot.slane %v3233, 2
        %v3277 = vsel %vm505, %v3276, %v3275
        %v3278 = vrot.slane %v3235, 1
        %v3279 = vsel %vm508, %v3278, %v3277
        %3282 = vst [vmem:[#allocation3 + $0x80] sm:$0xff] %v3265
        %3283 = vst [vmem:[#allocation3 + $0x88] sm:$0xff] %v3279
        %v3284 = vld [vmem:[%s5] sm:$0xff]
        %v3285 = vld [vmem:[#allocation3] sm:$0xff]
        %v3286 = vld [vmem:[#allocation3 + $0x8] sm:$0xff]
        %v3287 = vld [vmem:[#allocation3 + $0x10] sm:$0xff]
        %v3288 = vld [vmem:[#allocation3 + $0x18] sm:$0xff]
        %v3289 = vld [vmem:[#allocation3 + $0x20] sm:$0xff]
        %v3290 = vld [vmem:[#allocation3 + $0x28] sm:$0xff]
        %v3291 = vld [vmem:[#allocation3 + $0x30] sm:$0xff]
        %v3292 = vld [vmem:[#allocation3 + $0x38] sm:$0xff]
        %v3293 = vld [vmem:[#allocation3 + $0x40] sm:$0xff]
        %v3294 = vld [vmem:[#allocation3 + $0x48] sm:$0xff]
        %v3295 = vld [vmem:[#allocation3 + $0x50] sm:$0xff]
        %v3296 = vld [vmem:[#allocation3 + $0x58] sm:$0xff]
        %v3297 = vld [vmem:[#allocation3 + $0x60] sm:$0xff]
        %v3298 = vld [vmem:[#allocation3 + $0x68] sm:$0xff]
        %v3299 = vld [vmem:[#allocation3 + $0x70] sm:$0xff]
        %v3300 = vld [vmem:[#allocation3 + $0x78] sm:$0xff]
        %v3301 = vld [vmem:[#allocation3 + $0x80] sm:$0xff]
        %v3302 = vld [vmem:[#allocation3 + $0x88] sm:$0xff]
        %vm3303 = vcmask 588800
        %v3305 = vsel %vm3303, %v3284, 0
        %3307 = vmatprep.subr.mxu0 0.0
        %3308 = vmatpush1.msra.mxu0 0.0
        %3309 = vmatprep.subr.mxu0 0.0
        %3310 = vmatpush1.msra.mxu0 0.0
        %3311 = vmatprep.subr.mxu0 0.0
        %3312 = vmatpush1.msra.mxu0 0.0
        %3313 = vmatprep.subr.mxu0 0.0
        %3314 = vmatpush1.msra.mxu0 0.0
        %3315 = vmatprep.subr.mxu0 0.0
        %3316 = vmatpush1.msra.mxu0 0.0
        %3317 = vmatprep.subr.mxu0 0.0
        %3318 = vmatpush1.msra.mxu0 0.0
        %3319 = vmatprep.subr.mxu0 0.0
        %3320 = vmatpush1.msra.mxu0 0.0
        %3321 = vmatprep.subr.mxu0 %v3302
        %3322 = vmatpush1.msra.mxu0 %v3301
        %3323 = vmatprep.subr.mxu0 %v3300
        %3324 = vmatpush1.msra.mxu0 %v3299
        %3325 = vmatprep.subr.mxu0 %v3298
        %3326 = vmatpush1.msra.mxu0 %v3297
        %3327 = vmatprep.subr.mxu0 %v3296
        %3328 = vmatpush1.msra.mxu0 %v3295
        %3329 = vmatprep.subr.mxu0 %v3294
        %3330 = vmatpush1.msra.mxu0 %v3293
        %3331 = vmatprep.subr.mxu0 %v3292
        %3332 = vmatpush1.msra.mxu0 %v3291
        %3333 = vmatprep.subr.mxu0 %v3290
        %3334 = vmatpush1.msra.mxu0 %v3289
        %3335 = vmatprep.subr.mxu0 %v3288
        %3336 = vmatpush1.msra.mxu0 %v3287
        %3337 = vmatprep.subr.mxu0 %v3286
        %3338 = vmatpush1.msra.mxu0 %v3285
        %3339 = vmatprep.subr.mxu0 0.0
        %3340 = vmatpush2.msra.mxu0 0.0
        %3341 = vmatprep.subr.mxu0 0.0
        %3342 = vmatpush2.msra.mxu0 0.0
        %3343 = vmatprep.subr.mxu0 0.0
        %3344 = vmatpush2.msra.mxu0 0.0
        %3345 = vmatprep.subr.mxu0 0.0
        %3346 = vmatpush2.msra.mxu0 0.0
        %3347 = vmatprep.subr.mxu0 0.0
        %3348 = vmatpush2.msra.mxu0 0.0
        %3349 = vmatprep.subr.mxu0 0.0
        %3350 = vmatpush2.msra.mxu0 0.0
        %3351 = vmatprep.subr.mxu0 0.0
        %3352 = vmatpush2.msra.mxu0 0.0
        %3353 = vmatprep.subr.mxu0 0.0
        %3354 = vmatpush2.msra.mxu0 0.0
        %3355 = vmatprep.subr.mxu0 0.0
        %3356 = vmatpush2.msra.mxu0 0.0
        %3357 = vmatprep.subr.mxu0 0.0
        %3358 = vmatpush2.msra.mxu0 0.0
        %3359 = vmatprep.subr.mxu0 0.0
        %3360 = vmatpush2.msra.mxu0 0.0
        %3361 = vmatprep.subr.mxu0 0.0
        %3362 = vmatpush2.msra.mxu0 0.0
        %3363 = vmatprep.subr.mxu0 0.0
        %3364 = vmatpush2.msra.mxu0 0.0
        %3365 = vmatprep.subr.mxu0 0.0
        %3366 = vmatpush2.msra.mxu0 0.0
        %3367 = vmatprep.subr.mxu0 0.0
        %3368 = vmatpush2.msra.mxu0 0.0
        %3369 = vmatprep.subr.mxu0 0.0
        %3370 = vmatpush2.msra.mxu0 0.0
        %3371 = vmatprep.mubr.f32.mxu0 0.0
        %3372 = vmatmul.mubr.f32.gmra.mxu0 %v3305
        %v3373 = vpop.f32.mrf.mxu0
        %v3374 = vadd.f32 0.0, %v3373
        %v3375 = vpop.f32.mrf.mxu0
        %v3376 = vadd.f32 0.0, %v3375
        %3377 = vdwg.mxu0
        %v3378 = vadd.f32 %v2340, %v3374
        %v3379 = vadd.f32 %v2342, %v3376
        %v3380 = vtanh.pop %v3378
        %v3381 = vtanh.pop %v3379
        %v3382 = vld [vmem:[%s274] sm:$0xff]
        %v3383 = vld [vmem:[%s274 + $0x8] sm:$0xff]
        %v3384 = vsub.f32 %v3382, %v3380
        %v3385 = vsub.f32 %v3383, %v3381
        %v3386 = vmul.f32 %v2365, %v3384
        %v3387 = vmul.f32 %v2367, %v3385
        %v3388 = vadd.f32 %v3380, %v3386
        %v3389 = vadd.f32 %v3381, %v3387
        %3390 = vst [vmem:[%s311] sm:$0xff] %v3388
        %3391 = vst [vmem:[%s311 + $0x8] sm:$0xff] %v3389
        %s3392 = sand.u32 %s168, 1
        %s3393 = scalar_lea.sflag [#allocation6], %s3392
        %s3394 = sand.u32 %s168, 1
        %s3395 = smul.addr %s3394, 16
        %s3396 = scalar_lea.vmem [#allocation10], %s3395
        // Predicated region
        $region57: #{tpu_custom_call.1} parent=43 // pred_check
          %p3397 = pneg %p178
        $region58: #{tpu_custom_call.1} parent=43 // pred_check_branch
          %3399 = sbr.rel (%p3397) target = $region60
        $region59: #{tpu_custom_call.1} parent=43 // pred_region
          %s3401 = ssub.s32 256, 256
          %3402 = vsyncadd %s3393, %s3401
          %s3403 = smul.addr %s24, 2
          %s3404 = smul.addr %s3403, 128
          %s3405 = scalar_lea.hbm %s6, %s3404
          %s3407 = sshll.u32 %s3396, 4
          %s3408 = int_to_ptr.vmem [resolvable:$true] %s3407
          %3410 = dma.vmem_to_hbm [thread:$0]  %s3408, 256, %s3405, %s3393
        $region60: #{tpu_custom_call.1} parent=43 // pred_fallthru
          _
      $region44: #{tpu_custom_call.1} parent=5 // pred_fallthru
        _
      %p3411 = scmp.le.s32.totalorder 2, %s19
      // Predicated region
      $region61: #{tpu_custom_call.1} parent=5 // pred_check
        %p3412 = pneg %p3411
      $region62: #{tpu_custom_call.1} parent=5 // pred_check_branch
        %3414 = sbr.rel (%p3412) target = $region64
      $region63: #{tpu_custom_call.1} parent=5 // pred_region
        %s3415 = ssub.s32 %s19, 2
        // Predicated region
        $region65: #{tpu_custom_call.1} parent=63 // pred_check
          %p3416 = pneg %p184
        $region66: #{tpu_custom_call.1} parent=63 // pred_check_branch
          %3418 = sbr.rel (%p3416) target = $region68
        $region67: #{tpu_custom_call.1} parent=63 // pred_region
          %s3419 = sand.u32 %s169, 1
          %s3420 = scalar_lea.sflag [#allocation6], %s3419
          %s3421 = sand.u32 %s169, 1
          %s3422 = smul.addr %s3421, 16
          %s3423 = scalar_lea.vmem [#allocation10], %s3422
          %3424 = dma.done %s3420, 256
        $region68: #{tpu_custom_call.1} parent=63 // pred_fallthru
          _
      $region64: #{tpu_custom_call.1} parent=5 // pred_fallthru
        _
    $region6: #{tpu_custom_call.1} parent=1 // loop_footer
      %s23 = sadd.s32 1, %s19
    $region7: #{tpu_custom_call.1} parent=1 // loop_footer_branch
      %18 = sbr.rel target = $region3
    $region8: #{tpu_custom_call.1} parent=1 // loop_exit
      _
    %3425 = vsyncpa [#allocation5], 1
    %s3426 = scalar_lea.sflag [#allocation5], 1
    %3427 = vsyncpa %s3426, 1
    %3428 = vsyncpa [#allocation8], 1
    %s3429 = scalar_lea.sflag [#allocation8], 1
    %3430 = vsyncpa %s3429, 1
    %3431 = vsyncpa [#allocation6], 1
    %s3432 = scalar_lea.sflag [#allocation6], 1
    %3433 = vsyncpa %s3432, 1

</llo_original>
